<compile_context>
chip_gen: v7x
topology: tpu7x:2x2x1
jax: 0.10.0
libtpu: 0.0.40
codegen_flags: <defaults>
</compile_context>

<pallas_src>
import functools

import jax
import jax.numpy as jnp
from jax import lax
from jax.experimental import pallas as pl
from jax.experimental.pallas import tpu as pltpu

N_EMBED = 384            # n_embed in the PyTorch module
HEAD_SIZE = 64           # n_embed // n_head for the 6-head model
NEG_INF = -1e30
_Q_TILE = 128            # query-tile rows; caps vreg pressure at block_size=256


def _head_kernel(x_ref, wq_ref, wk_ref, wv_ref, o_ref, q_scr, k_scr, v_scr):
    bb, T, C = x_ref.shape          # bb = batch rows handled by this grid step
    hs = wq_ref.shape[1]

    # NOTE: the PyTorch source scales by C ** -0.5 with C = x.shape[-1]
    # (= n_embed), NOT head_size ** -0.5.  Intentional — do not "fix".
    scale = float(C) ** -0.5

    # ---- Q/K/V projections: all bb rows flattened into one MXU pass each ----
    # (cast is a no-op if the caller already supplies bf16 activations)
    xb = x_ref[...].reshape(bb * T, C).astype(jnp.bfloat16)
    q = jnp.dot(xb, wq_ref[...], preferred_element_type=jnp.float32)
    k = jnp.dot(xb, wk_ref[...], preferred_element_type=jnp.float32)
    v = jnp.dot(xb, wv_ref[...], preferred_element_type=jnp.float32)
    # fold the attention scale into q (T*hs elems) instead of the (T,T) scores
    q_scr[...] = (q * scale).astype(jnp.bfloat16)
    k_scr[...] = k.astype(jnp.bfloat16)
    v_scr[...] = v.astype(jnp.bfloat16)

    tq = min(T, _Q_TILE)
    n_q = T // tq                   # wrapper asserts divisibility

    def attend_tile(b, q0):
        # b: static batch row inside this block; q0: query-row offset (may be traced)
        q_t = q_scr[pl.ds(b * T + q0, tq), :]          # (tq, hs) bf16
        k_b = k_scr[pl.ds(b * T, T), :]                # (T, hs)  bf16
        v_b = v_scr[pl.ds(b * T, T), :]                # (T, hs)  bf16

        # scores = q @ k^T (contract head dim of both; no materialized transpose)
        s = lax.dot_general(q_t, k_b, (((1,), (1,)), ((), ())),
                            preferred_element_type=jnp.float32)        # (tq, T)

        # causal mask: global_row = q0 + local_row ; keep col <= row
        row = lax.broadcasted_iota(jnp.int32, (tq, T), 0) + q0
        col = lax.broadcasted_iota(jnp.int32, (tq, T), 1)
        s = jnp.where(col <= row, s, NEG_INF)

        # softmax in f32; denominator reciprocal on the EUP (approx ~2^-12 rel err)
        s = s - jnp.max(s, axis=-1, keepdims=True)
        p = jnp.exp(s)
        p = p * pl.reciprocal(jnp.sum(p, axis=-1, keepdims=True), approx=True)
        # attention dropout: identity in eval/inference mode

        o = jnp.dot(p.astype(jnp.bfloat16), v_b, preferred_element_type=jnp.float32)
        o_ref[b, pl.ds(q0, tq), :] = o.astype(o_ref.dtype)

    for b in range(bb):                         # static: bb is small (<= ~8)
        if n_q == 1:
            attend_tile(b, 0)                   # fully static fast path
        else:
            @pl.loop(0, n_q)                    # bounds live ranges per q tile
            def _(qi, b=b):
                attend_tile(b, pl.multiple_of(qi * tq, tq))


def _pick_batch_block(B, T, C):
    """Batch rows per grid step.

    Largest divisor of B such that (a) the grid keeps >= 2 steps when B >= 2
    (v7x: two TensorCores only help with >= 2 parallel steps) and (b) the
    per-step x tile stays <= ~2 MiB f32 (comfortable under v5e's 16 MiB
    default scoped VMEM with double buffering).
    """
    max_rows = max(1, (2 << 20) // max(1, T * C * 4))
    best = 1
    for cand in range(1, B + 1):
        if B % cand or cand > max_rows:
            continue
        if B // cand >= 2 or B <= 1:
            best = cand
    return best


@functools.partial(jax.jit, static_argnames=("out_dtype",))
def head_forward(x, wq, wk, wv, *, out_dtype=None):
    """Single self-attention head (eval mode).

    x:  (B, T, C) activations, f32 or bf16 (bf16 halves the dominant x DMA).
    wq/wk/wv: (C, head_size) — i.e. the PyTorch nn.Linear weight transposed.
    out_dtype: output dtype; defaults to x.dtype (pass jnp.bfloat16 if the
               downstream consumer accepts it to halve writeback bytes).
    """
    B, T, C = x.shape
    hs = wq.shape[1]
    assert wq.shape == wk.shape == wv.shape == (C, hs)
    tq = min(T, _Q_TILE)
    if T % tq:
        raise ValueError(f"T={T} must be a multiple of {tq} (or <= {_Q_TILE}).")
    out_dtype = out_dtype or x.dtype

    # bf16 weights: MXU-native, halves the (small) per-step weight DMA.
    wq = wq.astype(jnp.bfloat16)
    wk = wk.astype(jnp.bfloat16)
    wv = wv.astype(jnp.bfloat16)

    bb = _pick_batch_block(B, T, C)        # batch rows per grid step
    grid = (B // bb,)

    w_spec = pl.BlockSpec((C, hs), lambda i: (0, 0))

    return pl.pallas_call(
        _head_kernel,
        out_shape=jax.ShapeDtypeStruct((B, T, hs), out_dtype),
        grid_spec=pltpu.PrefetchScalarGridSpec(
            num_scalar_prefetch=0,
            grid=grid,
            in_specs=[
                pl.BlockSpec((bb, T, C), lambda i: (i, 0, 0)),   # x rows for this step
                w_spec, w_spec, w_spec,                          # Wq, Wk, Wv
            ],
            out_specs=pl.BlockSpec((bb, T, hs), lambda i: (i, 0, 0)),
            scratch_shapes=[
                pltpu.VMEM((bb * T, hs), jnp.bfloat16),   # q * C**-0.5
                pltpu.VMEM((bb * T, hs), jnp.bfloat16),   # k
                pltpu.VMEM((bb * T, hs), jnp.bfloat16),   # v
            ],
        ),
        compiler_params=pltpu.CompilerParams(
            # Independent per-batch-block output tiles -> v7x can shard across
            # its 2 TensorCores; harmless on v5e/v6e.  No vmem_limit_bytes
            # override: per-step footprint is < 2 MiB, defaults are ample.
            dimension_semantics=("parallel",),
        ),
    )(x, wq, wk, wv)


def _reference(x, wq, wk, wv):
    # Pure-JAX f32 reference mirroring the PyTorch forward (eval mode).
    C = x.shape[-1]
    q = x @ wq
    k = x @ wk
    v = x @ wv
    s = jnp.einsum("btd,bsd->bts", q, k) * (C ** -0.5)
    T = x.shape[1]
    mask = jnp.tril(jnp.ones((T, T), bool))
    s = jnp.where(mask[None], s, -jnp.inf)
    p = jax.nn.softmax(s, axis=-1)
    return jnp.einsum("bts,bsd->btd", p, v)


def _run_case(B, T, seed=0):
    key = jax.random.PRNGKey(seed)
    kx, k1, k2, k3 = jax.random.split(key, 4)
    x = jax.random.normal(kx, (B, T, N_EMBED), jnp.float32)
    wq = jax.random.normal(k1, (N_EMBED, HEAD_SIZE), jnp.float32) * 0.02
    wk = jax.random.normal(k2, (N_EMBED, HEAD_SIZE), jnp.float32) * 0.02
    wv = jax.random.normal(k3, (N_EMBED, HEAD_SIZE), jnp.float32) * 0.02

    out = head_forward(x, wq, wk, wv)
    jax.block_until_ready(out)
    assert out.shape == (B, T, HEAD_SIZE) and out.dtype == jnp.float32

    ref = _reference(x, wq, wk, wv)
    err = float(jnp.max(jnp.abs(out - ref)))
    assert err < 3e-2, f"B={B} T={T}: max abs error vs reference: {err}"


if __name__ == "__main__":
    # Primary small case (single query tile, one batch row per step).
    _run_case(B=2, T=128)
    # block_size-sized case: exercises batch blocking (bb=2) and the
    # pl.loop query-tiling path (n_q=2) that guards vreg pressure at T=256.
    _run_case(B=4, T=256)
    print("KERNEL_OK")
</pallas_src>

<mosaic_0001>
module attributes {stable_mosaic.version = 11 : i64} {
  func.func @_head_kernel(%arg0: i32, %arg1: memref<1x128x384xf32, #tpu.memory_space<vmem>>, %arg2: memref<384x64xbf16, #tpu.memory_space<vmem>>, %arg3: memref<384x64xbf16, #tpu.memory_space<vmem>>, %arg4: memref<384x64xbf16, #tpu.memory_space<vmem>>, %arg5: memref<1x128x64xf32, #tpu.memory_space<vmem>>, %arg6: memref<128x64xbf16, #tpu.memory_space<vmem>>, %arg7: memref<128x64xbf16, #tpu.memory_space<vmem>>, %arg8: memref<128x64xbf16, #tpu.memory_space<vmem>>) attributes {dimension_semantics = [#tpu.dimension_semantics<parallel>], iteration_bounds = array<i64: 2>, scalar_prefetch = 0 : i64, scratch_operands = 3 : i64, tpu.core_type = #tpu.core_type<tc>, window_params = [{transform_indices = @transform_0, window_bounds = array<i64: 1, 128, 384>}, {pipeline_mode = #tpu.pipeline_mode<synchronous>, transform_indices = @transform_1, window_bounds = array<i64: 384, 64>}, {pipeline_mode = #tpu.pipeline_mode<synchronous>, transform_indices = @transform_2, window_bounds = array<i64: 384, 64>}, {pipeline_mode = #tpu.pipeline_mode<synchronous>, transform_indices = @transform_3, window_bounds = array<i64: 384, 64>}, {transform_indices = @transform_4, window_bounds = array<i64: 1, 128, 64>}]} {
    %c0 = arith.constant 0 : index
    %c0_0 = arith.constant 0 : index
    %c0_1 = arith.constant 0 : index
    %0 = vector.load %arg1[%c0, %c0_0, %c0_1] : memref<1x128x384xf32, #tpu.memory_space<vmem>>, vector<1x128x384xf32>
    %1 = vector.shape_cast %0 : vector<1x128x384xf32> to vector<128x384xf32>
    %2 = arith.truncf %1 : vector<128x384xf32> to vector<128x384xbf16>
    %c0_2 = arith.constant 0 : index
    %c0_3 = arith.constant 0 : index
    %3 = vector.load %arg2[%c0_2, %c0_3] : memref<384x64xbf16, #tpu.memory_space<vmem>>, vector<384x64xbf16>
    %cst = arith.constant dense<0.000000e+00> : vector<128x64xf32>
    %4 = tpu.matmul %2, %3, %cst {dimension_numbers = #tpu.dot_dimension_numbers<[1], [0], [0], [1], [0, 0, 1, 1], [], []>} : vector<128x384xbf16>, vector<384x64xbf16>, vector<128x64xf32> -> vector<128x64xf32>
    %c0_4 = arith.constant 0 : index
    %c0_5 = arith.constant 0 : index
    %5 = vector.load %arg3[%c0_4, %c0_5] : memref<384x64xbf16, #tpu.memory_space<vmem>>, vector<384x64xbf16>
    %cst_6 = arith.constant dense<0.000000e+00> : vector<128x64xf32>
    %6 = tpu.matmul %2, %5, %cst_6 {dimension_numbers = #tpu.dot_dimension_numbers<[1], [0], [0], [1], [0, 0, 1, 1], [], []>} : vector<128x384xbf16>, vector<384x64xbf16>, vector<128x64xf32> -> vector<128x64xf32>
    %c0_7 = arith.constant 0 : index
    %c0_8 = arith.constant 0 : index
    %7 = vector.load %arg4[%c0_7, %c0_8] : memref<384x64xbf16, #tpu.memory_space<vmem>>, vector<384x64xbf16>
    %cst_9 = arith.constant dense<0.000000e+00> : vector<128x64xf32>
    %8 = tpu.matmul %2, %7, %cst_9 {dimension_numbers = #tpu.dot_dimension_numbers<[1], [0], [0], [1], [0, 0, 1, 1], [], []>} : vector<128x384xbf16>, vector<384x64xbf16>, vector<128x64xf32> -> vector<128x64xf32>
    %cst_10 = arith.constant 0.0510310382 : f32
    %9 = vector.broadcast %cst_10 : f32 to vector<128x64xf32>
    %10 = arith.mulf %4, %9 : vector<128x64xf32>
    %11 = arith.truncf %10 : vector<128x64xf32> to vector<128x64xbf16>
    %c0_11 = arith.constant 0 : index
    %c0_12 = arith.constant 0 : index
    %12 = vector.load %arg6[%c0_11, %c0_12] : memref<128x64xbf16, #tpu.memory_space<vmem>>, vector<128x64xbf16>
    tpu.vector_store %arg6[%c0_11, %c0_12], %11 {strides = array<i32>} : memref<128x64xbf16, #tpu.memory_space<vmem>>, vector<128x64xbf16>,
    %13 = arith.truncf %6 : vector<128x64xf32> to vector<128x64xbf16>
    %c0_13 = arith.constant 0 : index
    %c0_14 = arith.constant 0 : index
    %14 = vector.load %arg7[%c0_13, %c0_14] : memref<128x64xbf16, #tpu.memory_space<vmem>>, vector<128x64xbf16>
    tpu.vector_store %arg7[%c0_13, %c0_14], %13 {strides = array<i32>} : memref<128x64xbf16, #tpu.memory_space<vmem>>, vector<128x64xbf16>,
    %15 = arith.truncf %8 : vector<128x64xf32> to vector<128x64xbf16>
    %c0_15 = arith.constant 0 : index
    %c0_16 = arith.constant 0 : index
    %16 = vector.load %arg8[%c0_15, %c0_16] : memref<128x64xbf16, #tpu.memory_space<vmem>>, vector<128x64xbf16>
    tpu.vector_store %arg8[%c0_15, %c0_16], %15 {strides = array<i32>} : memref<128x64xbf16, #tpu.memory_space<vmem>>, vector<128x64xbf16>,
    %c0_17 = arith.constant 0 : index
    %c0_18 = arith.constant 0 : index
    %17 = vector.load %arg6[%c0_17, %c0_18] : memref<128x64xbf16, #tpu.memory_space<vmem>>, vector<128x64xbf16>
    %c0_19 = arith.constant 0 : index
    %c0_20 = arith.constant 0 : index
    %18 = vector.load %arg7[%c0_19, %c0_20] : memref<128x64xbf16, #tpu.memory_space<vmem>>, vector<128x64xbf16>
    %c0_21 = arith.constant 0 : index
    %c0_22 = arith.constant 0 : index
    %19 = vector.load %arg8[%c0_21, %c0_22] : memref<128x64xbf16, #tpu.memory_space<vmem>>, vector<128x64xbf16>
    %cst_23 = arith.constant dense<0.000000e+00> : vector<128x128xf32>
    %20 = tpu.matmul %17, %18, %cst_23 {dimension_numbers = #tpu.dot_dimension_numbers<[1], [1], [0], [0], [0, 0, 1, 0], [], []>} : vector<128x64xbf16>, vector<128x64xbf16>, vector<128x128xf32> -> vector<128x128xf32>
    %21 = tpu.iota {dimensions = array<i32: 0>} : vector<128x128xi32>
    %c0_i32 = arith.constant 0 : i32
    %22 = vector.broadcast %c0_i32 : i32 to vector<128x128xi32>
    %23 = arith.addi %21, %22 : vector<128x128xi32>
    %24 = tpu.iota {dimensions = array<i32: 1>} : vector<128x128xi32>
    %25 = arith.cmpi sle, %24, %23 : vector<128x128xi32>
    %cst_24 = arith.constant -1.000000e+30 : f32
    %26 = vector.broadcast %cst_24 : f32 to vector<128x128xf32>
    %27 = arith.select %25, %20, %26 : vector<128x128xi1>, vector<128x128xf32>
    %cst_25 = arith.constant dense<0xFF800000> : vector<128xf32>
    %28 = vector.multi_reduction <maximumf>, %27, %cst_25 [1] : vector<128x128xf32> to vector<128xf32>
    %29 = vector.shape_cast %28 : vector<128xf32> to vector<128x1xf32>
    %30 = vector.broadcast %29 : vector<128x1xf32> to vector<128x128xf32>
    %31 = arith.subf %27, %30 : vector<128x128xf32>
    %32 = math.exp %31 : vector<128x128xf32>
    %cst_26 = arith.constant dense<0.000000e+00> : vector<128xf32>
    %33 = vector.multi_reduction <add>, %32, %cst_26 [1] : vector<128x128xf32> to vector<128xf32>
    %34 = vector.shape_cast %33 : vector<128xf32> to vector<128x1xf32>
    %35 = tpu.reciprocal %34 {approx = true} : vector<128x1xf32> -> vector<128x1xf32>
    %36 = vector.broadcast %35 : vector<128x1xf32> to vector<128x128xf32>
    %37 = arith.mulf %32, %36 : vector<128x128xf32>
    %38 = arith.truncf %37 : vector<128x128xf32> to vector<128x128xbf16>
    %cst_27 = arith.constant dense<0.000000e+00> : vector<128x64xf32>
    %39 = tpu.matmul %38, %19, %cst_27 {dimension_numbers = #tpu.dot_dimension_numbers<[1], [0], [0], [1], [0, 0, 1, 1], [], []>} : vector<128x128xbf16>, vector<128x64xbf16>, vector<128x64xf32> -> vector<128x64xf32>
    %c0_28 = arith.constant 0 : index
    %c0_29 = arith.constant 0 : index
    %c0_30 = arith.constant 0 : index
    %40 = vector.load %arg5[%c0_28, %c0_29, %c0_30] : memref<1x128x64xf32, #tpu.memory_space<vmem>>, vector<1x128x64xf32>
    %41 = vector.shape_cast %40 : vector<1x128x64xf32> to vector<128x64xf32>
    %42 = vector.shape_cast %39 : vector<128x64xf32> to vector<1x128x64xf32>
    tpu.vector_store %arg5[%c0_28, %c0_29, %c0_30], %42 {strides = array<i32>} : memref<1x128x64xf32, #tpu.memory_space<vmem>>, vector<1x128x64xf32>,
    return
  }
  func.func @transform_0(%arg0: i32) -> (i32, i32, i32) {
    %c0_i32 = arith.constant 0 : i32
    %c0_i32_0 = arith.constant 0 : i32
    %c0_i32_1 = arith.constant 0 : i32
    return %arg0, %c0_i32, %c0_i32_0 : i32, i32, i32
  }
  func.func @transform_1(%arg0: i32) -> (i32, i32) {
    %c0_i32 = arith.constant 0 : i32
    %c0_i32_0 = arith.constant 0 : i32
    %c0_i32_1 = arith.constant 0 : i32
    return %c0_i32, %c0_i32_0 : i32, i32
  }
  func.func @transform_2(%arg0: i32) -> (i32, i32) {
    %c0_i32 = arith.constant 0 : i32
    %c0_i32_0 = arith.constant 0 : i32
    %c0_i32_1 = arith.constant 0 : i32
    return %c0_i32, %c0_i32_0 : i32, i32
  }
  func.func @transform_3(%arg0: i32) -> (i32, i32) {
    %c0_i32 = arith.constant 0 : i32
    %c0_i32_0 = arith.constant 0 : i32
    %c0_i32_1 = arith.constant 0 : i32
    return %c0_i32, %c0_i32_0 : i32, i32
  }
  func.func @transform_4(%arg0: i32) -> (i32, i32, i32) {
    %c0_i32 = arith.constant 0 : i32
    %c0_i32_0 = arith.constant 0 : i32
    %c0_i32_1 = arith.constant 0 : i32
    return %arg0, %c0_i32, %c0_i32_0 : i32, i32, i32
  }
}

</mosaic_0001>

<llo_original>
// kernel: head_forward.1
$region0: #{head_forward.1}
  #allocation0 [shape = 'u32[]', space=smem, size = 0x4, offset = 0x4, fixed_abs, tag = 'smem constant byte address 0x4 - core index']
  #allocation1 [shape = 'u32[144,128]{1,0:T(1,128)}', space=vmem, size = 0x12000, scoped, tag = 'internal scratch']
  #allocation2 [shape = 'bf16[128,64]{1,0:T(16,128)(2,1)}', space=vmem, size = 0x8000, scoped, tag = 'scratch operand']
  #allocation3 [shape = 'bf16[128,64]{1,0:T(16,128)(2,1)}', space=vmem, size = 0x8000, scoped, tag = 'scratch operand']
  #allocation4 [shape = 'bf16[128,64]{1,0:T(16,128)(2,1)}', space=vmem, size = 0x8000, scoped, tag = 'scratch operand']
  %s0 = inlined_call_operand.vmem [shape: f32[2,128,384], index: 0, kind: input, shape index: {}]
  %s1 = inlined_call_operand.vmem [shape: bf16[384,64], index: 1, kind: input, shape index: {}]
  %s2 = inlined_call_operand.vmem [shape: bf16[384,64], index: 2, kind: input, shape index: {}]
  %s3 = inlined_call_operand.vmem [shape: bf16[384,64], index: 3, kind: input, shape index: {}]
  %s4 = inlined_call_operand.vmem [shape: f32[2,128,64], index: 4, kind: output, shape index: {}]
  %s5 = sld [smem:[#allocation0]]
  $region49: #{head_forward.1} parent=0
    _
  %s7 = ssub.s32 1, %s5
  %s8 = scalar_select 0, %s7, %s5
  loop: start=0, step=1, limit=4
  $region2: #{head_forward.1} parent=0 // loop_pre_header
    _
  $region3: #{head_forward.1} parent=0 // loop_header
    %s10 = sphi 0, %s14
    %p11 = scmp.ge.s32.totalorder %s10, 4
    %s20 = sphi 0, %s22
    %s23 = sphi 0, %s20
    %s24 = sphi 0, %s23
    %s40 = sphi 0, %s24
    %s44 = sphi 0, %s44
    %s46 = sphi 0, %s44
    %s47 = sphi 0, %s46
    %s61 = sphi 0, %s47
    %s65 = sphi 0, %s65
    %s67 = sphi 0, %s65
    %s68 = sphi 0, %s67
    %s82 = sphi 0, %s68
    %s86 = sphi 0, %s86
    %s88 = sphi 0, %s86
    %s89 = sphi 0, %s88
    %s103 = sphi 0, %s89
    %s109 = sphi 0, %s111
    %s112 = sphi 0, %s109
    %s113 = sphi 0, %s112
    %s129 = sphi 0, %s113
  $region4: #{head_forward.1} parent=0 // loop_header_branch
    %13 = sbr.rel (%p11) target = $region8
  $region5: #{head_forward.1} parent=0 // loop_body
    %s15 = ssub.s32 %s10, 1
    %s16 = ssub.s32 %s10, 2
    %s17 = sadd.s32 %s10, 1
    %s18 = ssub.s32 %s10, %s17
    %p19 = scmp.eq.s32.totalorder %s18, 0
    %s21 = sadd.s32 %s20, 1
    %s22 = scalar_select %p19, %s20, %s21
    %p25 = pneg %p19
    %p26 = scmp.eq.s32.totalorder %s10, 1
    %p27 = por %p25, %p26
    %p28 = scmp.ne.s32.totalorder %s20, %s23
    %p29 = scmp.eq.s32.totalorder %s10, 0
    %p30 = por %p28, %p29
    %p31 = scmp.ne.s32.totalorder %s20, %s23
    %p32 = scmp.eq.s32.totalorder %s15, 1
    %p33 = por %p31, %p32
    %p34 = scmp.ne.s32.totalorder %s23, %s24
    %p35 = scmp.eq.s32.totalorder %s15, 0
    %p36 = por %p34, %p35
    %p37 = scmp.ne.s32.totalorder %s23, %s24
    %p38 = scmp.eq.s32.totalorder %s16, 1
    %p39 = por %p37, %p38
    %p41 = scmp.ne.s32.totalorder %s24, %s40
    %p42 = scmp.eq.s32.totalorder %s16, 0
    %p43 = por %p41, %p42
    %s45 = sadd.s32 %s44, 1
    %p48 = scmp.eq.s32.totalorder %s10, 1
    %p49 = scmp.ne.s32.totalorder %s44, %s46
    %p50 = scmp.eq.s32.totalorder %s10, 0
    %p51 = por %p49, %p50
    %p52 = scmp.ne.s32.totalorder %s44, %s46
    %p53 = scmp.eq.s32.totalorder %s15, 1
    %p54 = por %p52, %p53
    %p55 = scmp.ne.s32.totalorder %s46, %s47
    %p56 = scmp.eq.s32.totalorder %s15, 0
    %p57 = por %p55, %p56
    %p58 = scmp.ne.s32.totalorder %s46, %s47
    %p59 = scmp.eq.s32.totalorder %s16, 1
    %p60 = por %p58, %p59
    %p62 = scmp.ne.s32.totalorder %s47, %s61
    %p63 = scmp.eq.s32.totalorder %s16, 0
    %p64 = por %p62, %p63
    %s66 = sadd.s32 %s65, 1
    %p69 = scmp.eq.s32.totalorder %s10, 1
    %p70 = scmp.ne.s32.totalorder %s65, %s67
    %p71 = scmp.eq.s32.totalorder %s10, 0
    %p72 = por %p70, %p71
    %p73 = scmp.ne.s32.totalorder %s65, %s67
    %p74 = scmp.eq.s32.totalorder %s15, 1
    %p75 = por %p73, %p74
    %p76 = scmp.ne.s32.totalorder %s67, %s68
    %p77 = scmp.eq.s32.totalorder %s15, 0
    %p78 = por %p76, %p77
    %p79 = scmp.ne.s32.totalorder %s67, %s68
    %p80 = scmp.eq.s32.totalorder %s16, 1
    %p81 = por %p79, %p80
    %p83 = scmp.ne.s32.totalorder %s68, %s82
    %p84 = scmp.eq.s32.totalorder %s16, 0
    %p85 = por %p83, %p84
    %s87 = sadd.s32 %s86, 1
    %p90 = scmp.eq.s32.totalorder %s10, 1
    %p91 = scmp.ne.s32.totalorder %s86, %s88
    %p92 = scmp.eq.s32.totalorder %s10, 0
    %p93 = por %p91, %p92
    %p94 = scmp.ne.s32.totalorder %s86, %s88
    %p95 = scmp.eq.s32.totalorder %s15, 1
    %p96 = por %p94, %p95
    %p97 = scmp.ne.s32.totalorder %s88, %s89
    %p98 = scmp.eq.s32.totalorder %s15, 0
    %p99 = por %p97, %p98
    %p100 = scmp.ne.s32.totalorder %s88, %s89
    %p101 = scmp.eq.s32.totalorder %s16, 1
    %p102 = por %p100, %p101
    %p104 = scmp.ne.s32.totalorder %s89, %s103
    %p105 = scmp.eq.s32.totalorder %s16, 0
    %p106 = por %p104, %p105
    %s107 = ssub.s32 %s10, %s17
    %p108 = scmp.eq.s32.totalorder %s107, 0
    %s110 = sadd.s32 %s109, 1
    %s111 = scalar_select %p108, %s109, %s110
    %p114 = pneg %p108
    %p115 = scmp.eq.s32.totalorder %s10, 1
    %p116 = por %p114, %p115
    %p117 = scmp.ne.s32.totalorder %s109, %s112
    %p118 = scmp.eq.s32.totalorder %s10, 0
    %p119 = por %p117, %p118
    %p120 = scmp.ne.s32.totalorder %s109, %s112
    %p121 = scmp.eq.s32.totalorder %s15, 1
    %p122 = por %p120, %p121
    %p123 = scmp.ne.s32.totalorder %s112, %s113
    %p124 = scmp.eq.s32.totalorder %s15, 0
    %p125 = por %p123, %p124
    %p126 = scmp.ne.s32.totalorder %s112, %s113
    %p127 = scmp.eq.s32.totalorder %s16, 1
    %p128 = por %p126, %p127
    %p130 = scmp.ne.s32.totalorder %s113, %s129
    %p131 = scmp.eq.s32.totalorder %s16, 0
    %p132 = por %p130, %p131
    %p133 = scmp.le.s32.totalorder 1, %s10
    %p134 = scmp.lt.s32.totalorder %s10, 3
    %p135 = pnand %p133, %p134
    %p136 = pneg %p135
    // Predicated region
    $region9: #{head_forward.1} parent=5 // pred_check
      _
    $region10: #{head_forward.1} parent=5 // pred_check_branch
      %138 = sbr.rel (%p135) target = $region12
    $region11: #{head_forward.1} parent=5 // pred_region
      %s139 = ssub.s32 %s10, 1
      // Predicated region
      $region13: #{head_forward.1} parent=11 // pred_check
        %p140 = pneg %p57
      $region14: #{head_forward.1} parent=11 // pred_check_branch
        %142 = sbr.rel (%p140) target = $region16
      $region15: #{head_forward.1} parent=11 // pred_region
        _
      $region16: #{head_forward.1} parent=11 // pred_fallthru
        _
      // Predicated region
      $region17: #{head_forward.1} parent=11 // pred_check
        %p143 = pneg %p78
      $region18: #{head_forward.1} parent=11 // pred_check_branch
        %145 = sbr.rel (%p143) target = $region20
      $region19: #{head_forward.1} parent=11 // pred_region
        _
      $region20: #{head_forward.1} parent=11 // pred_fallthru
        _
      // Predicated region
      $region21: #{head_forward.1} parent=11 // pred_check
        %p146 = pneg %p99
      $region22: #{head_forward.1} parent=11 // pred_check_branch
        %148 = sbr.rel (%p146) target = $region24
      $region23: #{head_forward.1} parent=11 // pred_region
        _
      $region24: #{head_forward.1} parent=11 // pred_fallthru
        _
    $region12: #{head_forward.1} parent=5 // pred_fallthru
      _
    %p149 = scmp.lt.s32.totalorder %s10, 2
    // Predicated region
    $region25: #{head_forward.1} parent=5 // pred_check
      %p150 = pneg %p149
    $region26: #{head_forward.1} parent=5 // pred_check_branch
      %152 = sbr.rel (%p150) target = $region28
    $region27: #{head_forward.1} parent=5 // pred_region
      // Predicated region
      $region29: #{head_forward.1} parent=27 // pred_check
        %p153 = pneg %p30
      $region30: #{head_forward.1} parent=27 // pred_check_branch
        %155 = sbr.rel (%p153) target = $region32
      $region31: #{head_forward.1} parent=27 // pred_region
        %p156 = scmp.lt.s32.totalorder %s10, 1
        %s157 = scalar_select %p156, %s10, 1
        %s158 = smul.addr %s157, 48
        %s159 = smul.addr %s158, 8
        %s160 = scalar_lea.vmem %s0, %s159
      $region32: #{head_forward.1} parent=27 // pred_fallthru
        _
    $region28: #{head_forward.1} parent=5 // pred_fallthru
      _
    %p161 = scmp.le.s32.totalorder 1, %s10
    %p162 = scmp.lt.s32.totalorder %s10, 3
    %p163 = pnand %p161, %p162
    %p164 = pneg %p163
    // Predicated region
    $region33: #{head_forward.1} parent=5 // pred_check
      _
    $region34: #{head_forward.1} parent=5 // pred_check_branch
      %166 = sbr.rel (%p163) target = $region36
    $region35: #{head_forward.1} parent=5 // pred_region
      %s167 = ssub.s32 %s10, 1
      %p168 = scmp.lt.s32.totalorder %s15, 1
      %s169 = scalar_select %p168, %s15, 1
      %s170 = smul.addr %s169, 48
      %s171 = smul.addr %s170, 8
      %s172 = scalar_lea.vmem %s0, %s171
      %p173 = pneg %p36
      %p174 = pneg %p33
      %p175 = pneg %p57
      %p176 = pneg %p54
      %p177 = pneg %p78
      %p178 = pneg %p75
      %p179 = pneg %p99
      %p180 = pneg %p96
      %p181 = pneg %p125
      %p182 = pneg %p122
      %p183 = scmp.lt.s32.totalorder %s15, 1
      %s184 = scalar_select %p183, %s15, 1
      %s185 = smul.addr %s184, 16
      %s186 = smul.addr %s185, 8
      %s187 = scalar_lea.vmem %s4, %s186
      %p188 = scmp.lt.s32.totalorder %s15, 1
      %s189 = scalar_select %p188, %s15, 1
      %s190 = smul.addr %s189, 48
      %s191 = smul.addr %s190, 8
      %s192 = scalar_lea.vmem %s0, %s191
      %p193 = scmp.lt.s32.totalorder %s15, 1
      %s194 = scalar_select %p193, %s15, 1
      %s195 = smul.addr %s194, 16
      %s196 = smul.addr %s195, 8
      %s197 = scalar_lea.vmem %s4, %s196
      %v199 = vld [vmem:[%s192] sm:$0xff]
      %v200 = vld [vmem:[%s192 + $0x8] sm:$0xff]
      %v201 = vld [vmem:[%s192 + $0x10] sm:$0xff]
      %v202 = vld [vmem:[%s192 + $0x18] sm:$0xff]
      %v203 = vld [vmem:[%s192 + $0x20] sm:$0xff]
      %v204 = vld [vmem:[%s192 + $0x28] sm:$0xff]
      %v205 = vld [vmem:[%s192 + $0x30] sm:$0xff]
      %v206 = vld [vmem:[%s192 + $0x38] sm:$0xff]
      %v207 = vld [vmem:[%s192 + $0x40] sm:$0xff]
      %v208 = vld [vmem:[%s192 + $0x48] sm:$0xff]
      %v209 = vld [vmem:[%s192 + $0x50] sm:$0xff]
      %v210 = vld [vmem:[%s192 + $0x58] sm:$0xff]
      %v211 = vld [vmem:[%s192 + $0x60] sm:$0xff]
      %v212 = vld [vmem:[%s192 + $0x68] sm:$0xff]
      %v213 = vld [vmem:[%s192 + $0x70] sm:$0xff]
      %v214 = vld [vmem:[%s192 + $0x78] sm:$0xff]
      %v215 = vld [vmem:[%s192 + $0x80] sm:$0xff]
      %v216 = vld [vmem:[%s192 + $0x88] sm:$0xff]
      %v217 = vld [vmem:[%s192 + $0x90] sm:$0xff]
      %v218 = vld [vmem:[%s192 + $0x98] sm:$0xff]
      %v219 = vld [vmem:[%s192 + $0xa0] sm:$0xff]
      %v220 = vld [vmem:[%s192 + $0xa8] sm:$0xff]
      %v221 = vld [vmem:[%s192 + $0xb0] sm:$0xff]
      %v222 = vld [vmem:[%s192 + $0xb8] sm:$0xff]
      %v223 = vld [vmem:[%s192 + $0xc0] sm:$0xff]
      %v224 = vld [vmem:[%s192 + $0xc8] sm:$0xff]
      %v225 = vld [vmem:[%s192 + $0xd0] sm:$0xff]
      %v226 = vld [vmem:[%s192 + $0xd8] sm:$0xff]
      %v227 = vld [vmem:[%s192 + $0xe0] sm:$0xff]
      %v228 = vld [vmem:[%s192 + $0xe8] sm:$0xff]
      %v229 = vld [vmem:[%s192 + $0xf0] sm:$0xff]
      %v230 = vld [vmem:[%s192 + $0xf8] sm:$0xff]
      %v231 = vld [vmem:[%s192 + $0x100] sm:$0xff]
      %v232 = vld [vmem:[%s192 + $0x108] sm:$0xff]
      %v233 = vld [vmem:[%s192 + $0x110] sm:$0xff]
      %v234 = vld [vmem:[%s192 + $0x118] sm:$0xff]
      %v235 = vld [vmem:[%s192 + $0x120] sm:$0xff]
      %v236 = vld [vmem:[%s192 + $0x128] sm:$0xff]
      %v237 = vld [vmem:[%s192 + $0x130] sm:$0xff]
      %v238 = vld [vmem:[%s192 + $0x138] sm:$0xff]
      %v239 = vld [vmem:[%s192 + $0x140] sm:$0xff]
      %v240 = vld [vmem:[%s192 + $0x148] sm:$0xff]
      %v241 = vld [vmem:[%s192 + $0x150] sm:$0xff]
      %v242 = vld [vmem:[%s192 + $0x158] sm:$0xff]
      %v243 = vld [vmem:[%s192 + $0x160] sm:$0xff]
      %v244 = vld [vmem:[%s192 + $0x168] sm:$0xff]
      %v245 = vld [vmem:[%s192 + $0x170] sm:$0xff]
      %v246 = vld [vmem:[%s192 + $0x178] sm:$0xff]
      %v247 = vpack.c.bf16 %v202, %v199
      %v248 = vpack.c.bf16 %v203, %v200
      %v249 = vpack.c.bf16 %v204, %v201
      %v250 = vpack.c.bf16 %v208, %v205
      %v251 = vpack.c.bf16 %v209, %v206
      %v252 = vpack.c.bf16 %v210, %v207
      %v253 = vpack.c.bf16 %v214, %v211
      %v254 = vpack.c.bf16 %v215, %v212
      %v255 = vpack.c.bf16 %v216, %v213
      %v256 = vpack.c.bf16 %v220, %v217
      %v257 = vpack.c.bf16 %v221, %v218
      %v258 = vpack.c.bf16 %v222, %v219
      %v259 = vpack.c.bf16 %v226, %v223
      %v260 = vpack.c.bf16 %v227, %v224
      %v261 = vpack.c.bf16 %v228, %v225
      %v262 = vpack.c.bf16 %v232, %v229
      %v263 = vpack.c.bf16 %v233, %v230
      %v264 = vpack.c.bf16 %v234, %v231
      %v265 = vpack.c.bf16 %v238, %v235
      %v266 = vpack.c.bf16 %v239, %v236
      %v267 = vpack.c.bf16 %v240, %v237
      %v268 = vpack.c.bf16 %v244, %v241
      %v269 = vpack.c.bf16 %v245, %v242
      %v270 = vpack.c.bf16 %v246, %v243
      %v271 = vld [vmem:[%s1] sm:$0xf]
      %v272 = vld [vmem:[%s1 + $0x4] sm:$0xf]
      %v273 = vld [vmem:[%s1 + $0x8] sm:$0xf]
      %v274 = vld [vmem:[%s1 + $0xc] sm:$0xf]
      %v275 = vld [vmem:[%s1 + $0x10] sm:$0xf]
      %v276 = vld [vmem:[%s1 + $0x14] sm:$0xf]
      %v277 = vld [vmem:[%s1 + $0x18] sm:$0xf]
      %v278 = vld [vmem:[%s1 + $0x1c] sm:$0xf]
      %v279 = vld [vmem:[%s1 + $0x20] sm:$0xf]
      %v280 = vld [vmem:[%s1 + $0x24] sm:$0xf]
      %v281 = vld [vmem:[%s1 + $0x28] sm:$0xf]
      %v282 = vld [vmem:[%s1 + $0x2c] sm:$0xf]
      %v283 = vld [vmem:[%s1 + $0x30] sm:$0xf]
      %v284 = vld [vmem:[%s1 + $0x34] sm:$0xf]
      %v285 = vld [vmem:[%s1 + $0x38] sm:$0xf]
      %v286 = vld [vmem:[%s1 + $0x3c] sm:$0xf]
      %v287 = vld [vmem:[%s1 + $0x40] sm:$0xf]
      %v288 = vld [vmem:[%s1 + $0x44] sm:$0xf]
      %v289 = vld [vmem:[%s1 + $0x48] sm:$0xf]
      %v290 = vld [vmem:[%s1 + $0x4c] sm:$0xf]
      %v291 = vld [vmem:[%s1 + $0x50] sm:$0xf]
      %v292 = vld [vmem:[%s1 + $0x54] sm:$0xf]
      %v293 = vld [vmem:[%s1 + $0x58] sm:$0xf]
      %v294 = vld [vmem:[%s1 + $0x5c] sm:$0xf]
      %v295 = vld [vmem:[%s1 + $0x60] sm:$0xf]
      %v296 = vld [vmem:[%s1 + $0x64] sm:$0xf]
      %v297 = vld [vmem:[%s1 + $0x68] sm:$0xf]
      %v298 = vld [vmem:[%s1 + $0x6c] sm:$0xf]
      %v299 = vld [vmem:[%s1 + $0x70] sm:$0xf]
      %v300 = vld [vmem:[%s1 + $0x74] sm:$0xf]
      %v301 = vld [vmem:[%s1 + $0x78] sm:$0xf]
      %v302 = vld [vmem:[%s1 + $0x7c] sm:$0xf]
      %v303 = vld [vmem:[%s1 + $0x80] sm:$0xf]
      %v304 = vld [vmem:[%s1 + $0x84] sm:$0xf]
      %v305 = vld [vmem:[%s1 + $0x88] sm:$0xf]
      %v306 = vld [vmem:[%s1 + $0x8c] sm:$0xf]
      %v307 = vld [vmem:[%s1 + $0x90] sm:$0xf]
      %v308 = vld [vmem:[%s1 + $0x94] sm:$0xf]
      %v309 = vld [vmem:[%s1 + $0x98] sm:$0xf]
      %v310 = vld [vmem:[%s1 + $0x9c] sm:$0xf]
      %v311 = vld [vmem:[%s1 + $0xa0] sm:$0xf]
      %v312 = vld [vmem:[%s1 + $0xa4] sm:$0xf]
      %v313 = vld [vmem:[%s1 + $0xa8] sm:$0xf]
      %v314 = vld [vmem:[%s1 + $0xac] sm:$0xf]
      %v315 = vld [vmem:[%s1 + $0xb0] sm:$0xf]
      %v316 = vld [vmem:[%s1 + $0xb4] sm:$0xf]
      %v317 = vld [vmem:[%s1 + $0xb8] sm:$0xf]
      %v318 = vld [vmem:[%s1 + $0xbc] sm:$0xf]
      %v367 = vunpack.c.l.b16 %v271
      %v368 = vunpack.c.l.b16 %v272
      %v369 = vunpack.c.l.b16 %v273
      %v370 = vunpack.c.l.b16 %v274
      %v371 = vunpack.c.l.b16 %v275
      %v372 = vunpack.c.l.b16 %v276
      %v373 = vunpack.c.l.b16 %v277
      %v374 = vunpack.c.l.b16 %v278
      %v375 = vunpack.c.l.b16 %v279
      %v376 = vunpack.c.l.b16 %v280
      %v377 = vunpack.c.l.b16 %v281
      %v378 = vunpack.c.l.b16 %v282
      %v379 = vunpack.c.l.b16 %v283
      %v380 = vunpack.c.l.b16 %v284
      %v381 = vunpack.c.l.b16 %v285
      %v382 = vunpack.c.l.b16 %v286
      %v383 = vunpack.c.l.b16 %v287
      %v384 = vunpack.c.l.b16 %v288
      %v385 = vunpack.c.l.b16 %v289
      %v386 = vunpack.c.l.b16 %v290
      %v387 = vunpack.c.l.b16 %v291
      %v388 = vunpack.c.l.b16 %v292
      %v389 = vunpack.c.l.b16 %v293
      %v390 = vunpack.c.l.b16 %v294
      %v391 = vunpack.c.l.b16 %v295
      %v392 = vunpack.c.l.b16 %v296
      %v393 = vunpack.c.l.b16 %v297
      %v394 = vunpack.c.l.b16 %v298
      %v395 = vunpack.c.l.b16 %v299
      %v396 = vunpack.c.l.b16 %v300
      %v397 = vunpack.c.l.b16 %v301
      %v398 = vunpack.c.l.b16 %v302
      %v399 = vunpack.c.l.b16 %v303
      %v400 = vunpack.c.l.b16 %v304
      %v401 = vunpack.c.l.b16 %v305
      %v402 = vunpack.c.l.b16 %v306
      %v403 = vunpack.c.l.b16 %v307
      %v404 = vunpack.c.l.b16 %v308
      %v405 = vunpack.c.l.b16 %v309
      %v406 = vunpack.c.l.b16 %v310
      %v407 = vunpack.c.l.b16 %v311
      %v408 = vunpack.c.l.b16 %v312
      %v409 = vunpack.c.l.b16 %v313
      %v410 = vunpack.c.l.b16 %v314
      %v411 = vunpack.c.l.b16 %v315
      %v412 = vunpack.c.l.b16 %v316
      %v413 = vunpack.c.l.b16 %v317
      %v414 = vunpack.c.l.b16 %v318
      %v415 = vpack.c.b16 %v368, %v367
      %v416 = vpack.c.b16 %v370, %v369
      %v417 = vpack.c.b16 %v372, %v371
      %v418 = vpack.c.b16 %v374, %v373
      %v419 = vpack.c.b16 %v376, %v375
      %v420 = vpack.c.b16 %v378, %v377
      %v421 = vpack.c.b16 %v380, %v379
      %v422 = vpack.c.b16 %v382, %v381
      %v423 = vpack.c.b16 %v384, %v383
      %v424 = vpack.c.b16 %v386, %v385
      %v425 = vpack.c.b16 %v388, %v387
      %v426 = vpack.c.b16 %v390, %v389
      %v427 = vpack.c.b16 %v392, %v391
      %v428 = vpack.c.b16 %v394, %v393
      %v429 = vpack.c.b16 %v396, %v395
      %v430 = vpack.c.b16 %v398, %v397
      %v431 = vpack.c.b16 %v400, %v399
      %v432 = vpack.c.b16 %v402, %v401
      %v433 = vpack.c.b16 %v404, %v403
      %v434 = vpack.c.b16 %v406, %v405
      %v435 = vpack.c.b16 %v408, %v407
      %v436 = vpack.c.b16 %v410, %v409
      %v437 = vpack.c.b16 %v412, %v411
      %v438 = vpack.c.b16 %v414, %v413
      %463 = vmatprep.subr.bf16.mxu0 0
      %464 = vmatpush1.bf16.msra.mxu0 %v415
      %465 = vmatprep.subr.bf16.mxu0 0
      %466 = vmatpush1.bf16.msra.mxu0 %v416
      %467 = vmatprep.subr.bf16.mxu0 0
      %468 = vmatpush1.bf16.msra.mxu0 %v417
      %469 = vmatprep.subr.bf16.mxu0 0
      %470 = vmatpush1.bf16.msra.mxu0 %v418
      %471 = vmatprep.subr.bf16.mxu0 0
      %472 = vmatpush1.bf16.msra.mxu0 %v419
      %473 = vmatprep.subr.bf16.mxu0 0
      %474 = vmatpush1.bf16.msra.mxu0 %v420
      %475 = vmatprep.subr.bf16.mxu0 0
      %476 = vmatpush1.bf16.msra.mxu0 %v421
      %477 = vmatprep.subr.bf16.mxu0 0
      %478 = vmatpush1.bf16.msra.mxu0 %v422
      %479 = vmatprep.subr.bf16.mxu0 0
      %480 = vmatpush1.bf16.msra.mxu0 %v423
      %481 = vmatprep.subr.bf16.mxu0 0
      %482 = vmatpush1.bf16.msra.mxu0 %v424
      %483 = vmatprep.subr.bf16.mxu0 0
      %484 = vmatpush1.bf16.msra.mxu0 %v425
      %485 = vmatprep.subr.bf16.mxu0 0
      %486 = vmatpush1.bf16.msra.mxu0 %v426
      %487 = vmatprep.subr.bf16.mxu0 0
      %488 = vmatpush1.bf16.msra.mxu0 %v427
      %489 = vmatprep.subr.bf16.mxu0 0
      %490 = vmatpush1.bf16.msra.mxu0 %v428
      %491 = vmatprep.subr.bf16.mxu0 0
      %492 = vmatpush1.bf16.msra.mxu0 %v429
      %493 = vmatprep.subr.bf16.mxu0 0
      %494 = vmatpush1.bf16.msra.mxu0 %v430
      %495 = vmatprep.mubr.bf16.mxu0 %v248
      %496 = vmatmul.mubr.bf16.gmra.mrb[0].mxu0 %v247
      %v497 = vpop.f32.mrb[0].mxu0
      %v498 = vadd.f32 0.0, %v497
      %v499 = vpop.f32.mrb[0].mxu0
      %v500 = vpop.f32.mrb[0].mxu0
      %v501 = vadd.f32 0.0, %v500
      %v502 = vpop.f32.mrb[0].mxu0
      %503 = vmatprep.mubr.bf16.mxu0 %v251
      %504 = vmatmul.mubr.bf16.gmra.mrb[0].mxu0 %v250
      %v505 = vpop.f32.mrb[0].mxu0
      %v506 = vadd.f32 0.0, %v505
      %v507 = vpop.f32.mrb[0].mxu0
      %v508 = vpop.f32.mrb[0].mxu0
      %v509 = vadd.f32 0.0, %v508
      %v510 = vpop.f32.mrb[0].mxu0
      %511 = vmatprep.mubr.bf16.mxu0 %v254
      %512 = vmatmul.mubr.bf16.gmra.mrb[0].mxu0 %v253
      %v513 = vpop.f32.mrb[0].mxu0
      %v514 = vadd.f32 0.0, %v513
      %v515 = vpop.f32.mrb[0].mxu0
      %v516 = vpop.f32.mrb[0].mxu0
      %v517 = vadd.f32 0.0, %v516
      %v518 = vpop.f32.mrb[0].mxu0
      %519 = vmatprep.mubr.bf16.mxu0 %v257
      %520 = vmatmul.mubr.bf16.gmra.mrb[0].mxu0 %v256
      %v521 = vpop.f32.mrb[0].mxu0
      %v522 = vadd.f32 0.0, %v521
      %v523 = vpop.f32.mrb[0].mxu0
      %v524 = vpop.f32.mrb[0].mxu0
      %v525 = vadd.f32 0.0, %v524
      %v526 = vpop.f32.mrb[0].mxu0
      %527 = vmatprep.mubr.bf16.mxu0 %v260
      %528 = vmatmul.mubr.bf16.gmra.mrb[0].mxu0 %v259
      %v529 = vpop.f32.mrb[0].mxu0
      %v530 = vadd.f32 0.0, %v529
      %v531 = vpop.f32.mrb[0].mxu0
      %v532 = vpop.f32.mrb[0].mxu0
      %v533 = vadd.f32 0.0, %v532
      %v534 = vpop.f32.mrb[0].mxu0
      %535 = vmatprep.mubr.bf16.mxu0 %v263
      %536 = vmatmul.mubr.bf16.gmra.mrb[0].mxu0 %v262
      %v537 = vpop.f32.mrb[0].mxu0
      %v538 = vadd.f32 0.0, %v537
      %v539 = vpop.f32.mrb[0].mxu0
      %v540 = vpop.f32.mrb[0].mxu0
      %v541 = vadd.f32 0.0, %v540
      %v542 = vpop.f32.mrb[0].mxu0
      %543 = vmatprep.mubr.bf16.mxu0 %v266
      %544 = vmatmul.mubr.bf16.gmra.mrb[0].mxu0 %v265
      %v545 = vpop.f32.mrb[0].mxu0
      %v546 = vadd.f32 0.0, %v545
      %v547 = vpop.f32.mrb[0].mxu0
      %v548 = vpop.f32.mrb[0].mxu0
      %v549 = vadd.f32 0.0, %v548
      %v550 = vpop.f32.mrb[0].mxu0
      %551 = vmatprep.mubr.bf16.mxu0 %v269
      %552 = vmatmul.mubr.bf16.gmra.mrb[0].mxu0 %v268
      %v553 = vpop.f32.mrb[0].mxu0
      %v554 = vadd.f32 0.0, %v553
      %v555 = vpop.f32.mrb[0].mxu0
      %v556 = vpop.f32.mrb[0].mxu0
      %v557 = vadd.f32 0.0, %v556
      %v558 = vpop.f32.mrb[0].mxu0
      %559 = vdwg.mxu0
      %560 = vmatprep.subr.bf16.mxu0 0
      %561 = vmatpush1.bf16.msra.mxu0 %v431
      %562 = vmatprep.subr.bf16.mxu0 0
      %563 = vmatpush1.bf16.msra.mxu0 %v432
      %564 = vmatprep.subr.bf16.mxu0 0
      %565 = vmatpush1.bf16.msra.mxu0 %v433
      %566 = vmatprep.subr.bf16.mxu0 0
      %567 = vmatpush1.bf16.msra.mxu0 %v434
      %568 = vmatprep.subr.bf16.mxu0 0
      %569 = vmatpush1.bf16.msra.mxu0 %v435
      %570 = vmatprep.subr.bf16.mxu0 0
      %571 = vmatpush1.bf16.msra.mxu0 %v436
      %572 = vmatprep.subr.bf16.mxu0 0
      %573 = vmatpush1.bf16.msra.mxu0 %v437
      %574 = vmatprep.subr.bf16.mxu0 0
      %575 = vmatpush1.bf16.msra.mxu0 %v438
      %576 = vmatprep.subr.bf16.mxu0 0
      %577 = vmatpush1.bf16.msra.mxu0 0
      %578 = vmatprep.subr.bf16.mxu0 0
      %579 = vmatpush1.bf16.msra.mxu0 0
      %580 = vmatprep.subr.bf16.mxu0 0
      %581 = vmatpush1.bf16.msra.mxu0 0
      %582 = vmatprep.subr.bf16.mxu0 0
      %583 = vmatpush1.bf16.msra.mxu0 0
      %584 = vmatprep.subr.bf16.mxu0 0
      %585 = vmatpush1.bf16.msra.mxu0 0
      %586 = vmatprep.subr.bf16.mxu0 0
      %587 = vmatpush1.bf16.msra.mxu0 0
      %588 = vmatprep.subr.bf16.mxu0 0
      %589 = vmatpush1.bf16.msra.mxu0 0
      %590 = vmatprep.subr.bf16.mxu0 0
      %591 = vmatpush1.bf16.msra.mxu0 0
      %592 = vmatprep.mubr.bf16.mxu0 0
      %593 = vmatmul.mubr.bf16.gmra.mrb[0].mxu0 %v249
      %v594 = vpop.f32.mrb[0].mxu0
      %v595 = vadd.f32 %v498, %v594
      %v596 = vpop.f32.mrb[0].mxu0
      %v597 = vpop.f32.mrb[0].mxu0
      %v598 = vadd.f32 %v501, %v597
      %v599 = vpop.f32.mrb[0].mxu0
      %600 = vmatprep.mubr.bf16.mxu0 0
      %601 = vmatmul.mubr.bf16.gmra.mrb[0].mxu0 %v252
      %v602 = vpop.f32.mrb[0].mxu0
      %v603 = vadd.f32 %v506, %v602
      %v604 = vpop.f32.mrb[0].mxu0
      %v605 = vpop.f32.mrb[0].mxu0
      %v606 = vadd.f32 %v509, %v605
      %v607 = vpop.f32.mrb[0].mxu0
      %608 = vmatprep.mubr.bf16.mxu0 0
      %609 = vmatmul.mubr.bf16.gmra.mrb[0].mxu0 %v255
      %v610 = vpop.f32.mrb[0].mxu0
      %v611 = vadd.f32 %v514, %v610
      %v612 = vpop.f32.mrb[0].mxu0
      %v613 = vpop.f32.mrb[0].mxu0
      %v614 = vadd.f32 %v517, %v613
      %v615 = vpop.f32.mrb[0].mxu0
      %616 = vmatprep.mubr.bf16.mxu0 0
      %617 = vmatmul.mubr.bf16.gmra.mrb[0].mxu0 %v258
      %v618 = vpop.f32.mrb[0].mxu0
      %v619 = vadd.f32 %v522, %v618
      %v620 = vpop.f32.mrb[0].mxu0
      %v621 = vpop.f32.mrb[0].mxu0
      %v622 = vadd.f32 %v525, %v621
      %v623 = vpop.f32.mrb[0].mxu0
      %624 = vmatprep.mubr.bf16.mxu0 0
      %625 = vmatmul.mubr.bf16.gmra.mrb[0].mxu0 %v261
      %v626 = vpop.f32.mrb[0].mxu0
      %v627 = vadd.f32 %v530, %v626
      %v628 = vpop.f32.mrb[0].mxu0
      %v629 = vpop.f32.mrb[0].mxu0
      %v630 = vadd.f32 %v533, %v629
      %v631 = vpop.f32.mrb[0].mxu0
      %632 = vmatprep.mubr.bf16.mxu0 0
      %633 = vmatmul.mubr.bf16.gmra.mrb[0].mxu0 %v264
      %v634 = vpop.f32.mrb[0].mxu0
      %v635 = vadd.f32 %v538, %v634
      %v636 = vpop.f32.mrb[0].mxu0
      %v637 = vpop.f32.mrb[0].mxu0
      %v638 = vadd.f32 %v541, %v637
      %v639 = vpop.f32.mrb[0].mxu0
      %640 = vmatprep.mubr.bf16.mxu0 0
      %641 = vmatmul.mubr.bf16.gmra.mrb[0].mxu0 %v267
      %v642 = vpop.f32.mrb[0].mxu0
      %v643 = vadd.f32 %v546, %v642
      %v644 = vpop.f32.mrb[0].mxu0
      %v645 = vpop.f32.mrb[0].mxu0
      %v646 = vadd.f32 %v549, %v645
      %v647 = vpop.f32.mrb[0].mxu0
      %648 = vmatprep.mubr.bf16.mxu0 0
      %649 = vmatmul.mubr.bf16.gmra.mrb[0].mxu0 %v270
      %v650 = vpop.f32.mrb[0].mxu0
      %v651 = vadd.f32 %v554, %v650
      %v652 = vpop.f32.mrb[0].mxu0
      %v653 = vpop.f32.mrb[0].mxu0
      %v654 = vadd.f32 %v557, %v653
      %v655 = vpop.f32.mrb[0].mxu0
      %656 = vdwg.mxu0
      %v657 = vld [vmem:[%s2] sm:$0xf]
      %v658 = vld [vmem:[%s2 + $0x4] sm:$0xf]
      %v659 = vld [vmem:[%s2 + $0x8] sm:$0xf]
      %v660 = vld [vmem:[%s2 + $0xc] sm:$0xf]
      %v661 = vld [vmem:[%s2 + $0x10] sm:$0xf]
      %v662 = vld [vmem:[%s2 + $0x14] sm:$0xf]
      %v663 = vld [vmem:[%s2 + $0x18] sm:$0xf]
      %v664 = vld [vmem:[%s2 + $0x1c] sm:$0xf]
      %v665 = vld [vmem:[%s2 + $0x20] sm:$0xf]
      %v666 = vld [vmem:[%s2 + $0x24] sm:$0xf]
      %v667 = vld [vmem:[%s2 + $0x28] sm:$0xf]
      %v668 = vld [vmem:[%s2 + $0x2c] sm:$0xf]
      %v669 = vld [vmem:[%s2 + $0x30] sm:$0xf]
      %v670 = vld [vmem:[%s2 + $0x34] sm:$0xf]
      %v671 = vld [vmem:[%s2 + $0x38] sm:$0xf]
      %v672 = vld [vmem:[%s2 + $0x3c] sm:$0xf]
      %v673 = vld [vmem:[%s2 + $0x40] sm:$0xf]
      %v674 = vld [vmem:[%s2 + $0x44] sm:$0xf]
      %v675 = vld [vmem:[%s2 + $0x48] sm:$0xf]
      %v676 = vld [vmem:[%s2 + $0x4c] sm:$0xf]
      %v677 = vld [vmem:[%s2 + $0x50] sm:$0xf]
      %v678 = vld [vmem:[%s2 + $0x54] sm:$0xf]
      %v679 = vld [vmem:[%s2 + $0x58] sm:$0xf]
      %v680 = vld [vmem:[%s2 + $0x5c] sm:$0xf]
      %v681 = vld [vmem:[%s2 + $0x60] sm:$0xf]
      %v682 = vld [vmem:[%s2 + $0x64] sm:$0xf]
      %v683 = vld [vmem:[%s2 + $0x68] sm:$0xf]
      %v684 = vld [vmem:[%s2 + $0x6c] sm:$0xf]
      %v685 = vld [vmem:[%s2 + $0x70] sm:$0xf]
      %v686 = vld [vmem:[%s2 + $0x74] sm:$0xf]
      %v687 = vld [vmem:[%s2 + $0x78] sm:$0xf]
      %v688 = vld [vmem:[%s2 + $0x7c] sm:$0xf]
      %v689 = vld [vmem:[%s2 + $0x80] sm:$0xf]
      %v690 = vld [vmem:[%s2 + $0x84] sm:$0xf]
      %v691 = vld [vmem:[%s2 + $0x88] sm:$0xf]
      %v692 = vld [vmem:[%s2 + $0x8c] sm:$0xf]
      %v693 = vld [vmem:[%s2 + $0x90] sm:$0xf]
      %v694 = vld [vmem:[%s2 + $0x94] sm:$0xf]
      %v695 = vld [vmem:[%s2 + $0x98] sm:$0xf]
      %v696 = vld [vmem:[%s2 + $0x9c] sm:$0xf]
      %v697 = vld [vmem:[%s2 + $0xa0] sm:$0xf]
      %v698 = vld [vmem:[%s2 + $0xa4] sm:$0xf]
      %v699 = vld [vmem:[%s2 + $0xa8] sm:$0xf]
      %v700 = vld [vmem:[%s2 + $0xac] sm:$0xf]
      %v701 = vld [vmem:[%s2 + $0xb0] sm:$0xf]
      %v702 = vld [vmem:[%s2 + $0xb4] sm:$0xf]
      %v703 = vld [vmem:[%s2 + $0xb8] sm:$0xf]
      %v704 = vld [vmem:[%s2 + $0xbc] sm:$0xf]
      %v753 = vunpack.c.l.b16 %v657
      %v754 = vunpack.c.l.b16 %v658
      %v755 = vunpack.c.l.b16 %v659
      %v756 = vunpack.c.l.b16 %v660
      %v757 = vunpack.c.l.b16 %v661
      %v758 = vunpack.c.l.b16 %v662
      %v759 = vunpack.c.l.b16 %v663
      %v760 = vunpack.c.l.b16 %v664
      %v761 = vunpack.c.l.b16 %v665
      %v762 = vunpack.c.l.b16 %v666
      %v763 = vunpack.c.l.b16 %v667
      %v764 = vunpack.c.l.b16 %v668
      %v765 = vunpack.c.l.b16 %v669
      %v766 = vunpack.c.l.b16 %v670
      %v767 = vunpack.c.l.b16 %v671
      %v768 = vunpack.c.l.b16 %v672
      %v769 = vunpack.c.l.b16 %v673
      %v770 = vunpack.c.l.b16 %v674
      %v771 = vunpack.c.l.b16 %v675
      %v772 = vunpack.c.l.b16 %v676
      %v773 = vunpack.c.l.b16 %v677
      %v774 = vunpack.c.l.b16 %v678
      %v775 = vunpack.c.l.b16 %v679
      %v776 = vunpack.c.l.b16 %v680
      %v777 = vunpack.c.l.b16 %v681
      %v778 = vunpack.c.l.b16 %v682
      %v779 = vunpack.c.l.b16 %v683
      %v780 = vunpack.c.l.b16 %v684
      %v781 = vunpack.c.l.b16 %v685
      %v782 = vunpack.c.l.b16 %v686
      %v783 = vunpack.c.l.b16 %v687
      %v784 = vunpack.c.l.b16 %v688
      %v785 = vunpack.c.l.b16 %v689
      %v786 = vunpack.c.l.b16 %v690
      %v787 = vunpack.c.l.b16 %v691
      %v788 = vunpack.c.l.b16 %v692
      %v789 = vunpack.c.l.b16 %v693
      %v790 = vunpack.c.l.b16 %v694
      %v791 = vunpack.c.l.b16 %v695
      %v792 = vunpack.c.l.b16 %v696
      %v793 = vunpack.c.l.b16 %v697
      %v794 = vunpack.c.l.b16 %v698
      %v795 = vunpack.c.l.b16 %v699
      %v796 = vunpack.c.l.b16 %v700
      %v797 = vunpack.c.l.b16 %v701
      %v798 = vunpack.c.l.b16 %v702
      %v799 = vunpack.c.l.b16 %v703
      %v800 = vunpack.c.l.b16 %v704
      %v801 = vpack.c.b16 %v754, %v753
      %v802 = vpack.c.b16 %v756, %v755
      %v803 = vpack.c.b16 %v758, %v757
      %v804 = vpack.c.b16 %v760, %v759
      %v805 = vpack.c.b16 %v762, %v761
      %v806 = vpack.c.b16 %v764, %v763
      %v807 = vpack.c.b16 %v766, %v765
      %v808 = vpack.c.b16 %v768, %v767
      %v809 = vpack.c.b16 %v770, %v769
      %v810 = vpack.c.b16 %v772, %v771
      %v811 = vpack.c.b16 %v774, %v773
      %v812 = vpack.c.b16 %v776, %v775
      %v813 = vpack.c.b16 %v778, %v777
      %v814 = vpack.c.b16 %v780, %v779
      %v815 = vpack.c.b16 %v782, %v781
      %v816 = vpack.c.b16 %v784, %v783
      %v817 = vpack.c.b16 %v786, %v785
      %v818 = vpack.c.b16 %v788, %v787
      %v819 = vpack.c.b16 %v790, %v789
      %v820 = vpack.c.b16 %v792, %v791
      %v821 = vpack.c.b16 %v794, %v793
      %v822 = vpack.c.b16 %v796, %v795
      %v823 = vpack.c.b16 %v798, %v797
      %v824 = vpack.c.b16 %v800, %v799
      %849 = vmatprep.subr.bf16.mxu0 0
      %850 = vmatpush1.bf16.msra.mxu0 %v801
      %851 = vmatprep.subr.bf16.mxu0 0
      %852 = vmatpush1.bf16.msra.mxu0 %v802
      %853 = vmatprep.subr.bf16.mxu0 0
      %854 = vmatpush1.bf16.msra.mxu0 %v803
      %855 = vmatprep.subr.bf16.mxu0 0
      %856 = vmatpush1.bf16.msra.mxu0 %v804
      %857 = vmatprep.subr.bf16.mxu0 0
      %858 = vmatpush1.bf16.msra.mxu0 %v805
      %859 = vmatprep.subr.bf16.mxu0 0
      %860 = vmatpush1.bf16.msra.mxu0 %v806
      %861 = vmatprep.subr.bf16.mxu0 0
      %862 = vmatpush1.bf16.msra.mxu0 %v807
      %863 = vmatprep.subr.bf16.mxu0 0
      %864 = vmatpush1.bf16.msra.mxu0 %v808
      %865 = vmatprep.subr.bf16.mxu0 0
      %866 = vmatpush1.bf16.msra.mxu0 %v809
      %867 = vmatprep.subr.bf16.mxu0 0
      %868 = vmatpush1.bf16.msra.mxu0 %v810
      %869 = vmatprep.subr.bf16.mxu0 0
      %870 = vmatpush1.bf16.msra.mxu0 %v811
      %871 = vmatprep.subr.bf16.mxu0 0
      %872 = vmatpush1.bf16.msra.mxu0 %v812
      %873 = vmatprep.subr.bf16.mxu0 0
      %874 = vmatpush1.bf16.msra.mxu0 %v813
      %875 = vmatprep.subr.bf16.mxu0 0
      %876 = vmatpush1.bf16.msra.mxu0 %v814
      %877 = vmatprep.subr.bf16.mxu0 0
      %878 = vmatpush1.bf16.msra.mxu0 %v815
      %879 = vmatprep.subr.bf16.mxu0 0
      %880 = vmatpush1.bf16.msra.mxu0 %v816
      %881 = vmatprep.mubr.bf16.mxu0 %v248
      %882 = vmatmul.mubr.bf16.gmra.mrb[0].mxu0 %v247
      %v883 = vpop.f32.mrb[0].mxu0
      %v884 = vadd.f32 0.0, %v883
      %v885 = vpop.f32.mrb[0].mxu0
      %v886 = vpop.f32.mrb[0].mxu0
      %v887 = vadd.f32 0.0, %v886
      %v888 = vpop.f32.mrb[0].mxu0
      %889 = vmatprep.mubr.bf16.mxu0 %v251
      %890 = vmatmul.mubr.bf16.gmra.mrb[0].mxu0 %v250
      %v891 = vpop.f32.mrb[0].mxu0
      %v892 = vadd.f32 0.0, %v891
      %v893 = vpop.f32.mrb[0].mxu0
      %v894 = vpop.f32.mrb[0].mxu0
      %v895 = vadd.f32 0.0, %v894
      %v896 = vpop.f32.mrb[0].mxu0
      %897 = vmatprep.mubr.bf16.mxu0 %v254
      %898 = vmatmul.mubr.bf16.gmra.mrb[0].mxu0 %v253
      %v899 = vpop.f32.mrb[0].mxu0
      %v900 = vadd.f32 0.0, %v899
      %v901 = vpop.f32.mrb[0].mxu0
      %v902 = vpop.f32.mrb[0].mxu0
      %v903 = vadd.f32 0.0, %v902
      %v904 = vpop.f32.mrb[0].mxu0
      %905 = vmatprep.mubr.bf16.mxu0 %v257
      %906 = vmatmul.mubr.bf16.gmra.mrb[0].mxu0 %v256
      %v907 = vpop.f32.mrb[0].mxu0
      %v908 = vadd.f32 0.0, %v907
      %v909 = vpop.f32.mrb[0].mxu0
      %v910 = vpop.f32.mrb[0].mxu0
      %v911 = vadd.f32 0.0, %v910
      %v912 = vpop.f32.mrb[0].mxu0
      %913 = vmatprep.mubr.bf16.mxu0 %v260
      %914 = vmatmul.mubr.bf16.gmra.mrb[0].mxu0 %v259
      %v915 = vpop.f32.mrb[0].mxu0
      %v916 = vadd.f32 0.0, %v915
      %v917 = vpop.f32.mrb[0].mxu0
      %v918 = vpop.f32.mrb[0].mxu0
      %v919 = vadd.f32 0.0, %v918
      %v920 = vpop.f32.mrb[0].mxu0
      %921 = vmatprep.mubr.bf16.mxu0 %v263
      %922 = vmatmul.mubr.bf16.gmra.mrb[0].mxu0 %v262
      %v923 = vpop.f32.mrb[0].mxu0
      %v924 = vadd.f32 0.0, %v923
      %v925 = vpop.f32.mrb[0].mxu0
      %v926 = vpop.f32.mrb[0].mxu0
      %v927 = vadd.f32 0.0, %v926
      %v928 = vpop.f32.mrb[0].mxu0
      %929 = vmatprep.mubr.bf16.mxu0 %v266
      %930 = vmatmul.mubr.bf16.gmra.mrb[0].mxu0 %v265
      %v931 = vpop.f32.mrb[0].mxu0
      %v932 = vadd.f32 0.0, %v931
      %v933 = vpop.f32.mrb[0].mxu0
      %v934 = vpop.f32.mrb[0].mxu0
      %v935 = vadd.f32 0.0, %v934
      %v936 = vpop.f32.mrb[0].mxu0
      %937 = vmatprep.mubr.bf16.mxu0 %v269
      %938 = vmatmul.mubr.bf16.gmra.mrb[0].mxu0 %v268
      %v939 = vpop.f32.mrb[0].mxu0
      %v940 = vadd.f32 0.0, %v939
      %v941 = vpop.f32.mrb[0].mxu0
      %v942 = vpop.f32.mrb[0].mxu0
      %v943 = vadd.f32 0.0, %v942
      %v944 = vpop.f32.mrb[0].mxu0
      %945 = vdwg.mxu0
      %946 = vmatprep.subr.bf16.mxu0 0
      %947 = vmatpush1.bf16.msra.mxu0 %v817
      %948 = vmatprep.subr.bf16.mxu0 0
      %949 = vmatpush1.bf16.msra.mxu0 %v818
      %950 = vmatprep.subr.bf16.mxu0 0
      %951 = vmatpush1.bf16.msra.mxu0 %v819
      %952 = vmatprep.subr.bf16.mxu0 0
      %953 = vmatpush1.bf16.msra.mxu0 %v820
      %954 = vmatprep.subr.bf16.mxu0 0
      %955 = vmatpush1.bf16.msra.mxu0 %v821
      %956 = vmatprep.subr.bf16.mxu0 0
      %957 = vmatpush1.bf16.msra.mxu0 %v822
      %958 = vmatprep.subr.bf16.mxu0 0
      %959 = vmatpush1.bf16.msra.mxu0 %v823
      %960 = vmatprep.subr.bf16.mxu0 0
      %961 = vmatpush1.bf16.msra.mxu0 %v824
      %962 = vmatprep.subr.bf16.mxu0 0
      %963 = vmatpush1.bf16.msra.mxu0 0
      %964 = vmatprep.subr.bf16.mxu0 0
      %965 = vmatpush1.bf16.msra.mxu0 0
      %966 = vmatprep.subr.bf16.mxu0 0
      %967 = vmatpush1.bf16.msra.mxu0 0
      %968 = vmatprep.subr.bf16.mxu0 0
      %969 = vmatpush1.bf16.msra.mxu0 0
      %970 = vmatprep.subr.bf16.mxu0 0
      %971 = vmatpush1.bf16.msra.mxu0 0
      %972 = vmatprep.subr.bf16.mxu0 0
      %973 = vmatpush1.bf16.msra.mxu0 0
      %974 = vmatprep.subr.bf16.mxu0 0
      %975 = vmatpush1.bf16.msra.mxu0 0
      %976 = vmatprep.subr.bf16.mxu0 0
      %977 = vmatpush1.bf16.msra.mxu0 0
      %978 = vmatprep.mubr.bf16.mxu0 0
      %979 = vmatmul.mubr.bf16.gmra.mrb[0].mxu0 %v249
      %v980 = vpop.f32.mrb[0].mxu0
      %v981 = vadd.f32 %v884, %v980
      %v982 = vpop.f32.mrb[0].mxu0
      %v983 = vpop.f32.mrb[0].mxu0
      %v984 = vadd.f32 %v887, %v983
      %v985 = vpop.f32.mrb[0].mxu0
      %986 = vmatprep.mubr.bf16.mxu0 0
      %987 = vmatmul.mubr.bf16.gmra.mrb[0].mxu0 %v252
      %v988 = vpop.f32.mrb[0].mxu0
      %v989 = vadd.f32 %v892, %v988
      %v990 = vpop.f32.mrb[0].mxu0
      %v991 = vpop.f32.mrb[0].mxu0
      %v992 = vadd.f32 %v895, %v991
      %v993 = vpop.f32.mrb[0].mxu0
      %994 = vmatprep.mubr.bf16.mxu0 0
      %995 = vmatmul.mubr.bf16.gmra.mrb[0].mxu0 %v255
      %v996 = vpop.f32.mrb[0].mxu0
      %v997 = vadd.f32 %v900, %v996
      %v998 = vpop.f32.mrb[0].mxu0
      %v999 = vpop.f32.mrb[0].mxu0
      %v1000 = vadd.f32 %v903, %v999
      %v1001 = vpop.f32.mrb[0].mxu0
      %1002 = vmatprep.mubr.bf16.mxu0 0
      %1003 = vmatmul.mubr.bf16.gmra.mrb[0].mxu0 %v258
      %v1004 = vpop.f32.mrb[0].mxu0
      %v1005 = vadd.f32 %v908, %v1004
      %v1006 = vpop.f32.mrb[0].mxu0
      %v1007 = vpop.f32.mrb[0].mxu0
      %v1008 = vadd.f32 %v911, %v1007
      %v1009 = vpop.f32.mrb[0].mxu0
      %1010 = vmatprep.mubr.bf16.mxu0 0
      %1011 = vmatmul.mubr.bf16.gmra.mrb[0].mxu0 %v261
      %v1012 = vpop.f32.mrb[0].mxu0
      %v1013 = vadd.f32 %v916, %v1012
      %v1014 = vpop.f32.mrb[0].mxu0
      %v1015 = vpop.f32.mrb[0].mxu0
      %v1016 = vadd.f32 %v919, %v1015
      %v1017 = vpop.f32.mrb[0].mxu0
      %1018 = vmatprep.mubr.bf16.mxu0 0
      %1019 = vmatmul.mubr.bf16.gmra.mrb[0].mxu0 %v264
      %v1020 = vpop.f32.mrb[0].mxu0
      %v1021 = vadd.f32 %v924, %v1020
      %v1022 = vpop.f32.mrb[0].mxu0
      %v1023 = vpop.f32.mrb[0].mxu0
      %v1024 = vadd.f32 %v927, %v1023
      %v1025 = vpop.f32.mrb[0].mxu0
      %1026 = vmatprep.mubr.bf16.mxu0 0
      %1027 = vmatmul.mubr.bf16.gmra.mrb[0].mxu0 %v267
      %v1028 = vpop.f32.mrb[0].mxu0
      %v1029 = vadd.f32 %v932, %v1028
      %v1030 = vpop.f32.mrb[0].mxu0
      %v1031 = vpop.f32.mrb[0].mxu0
      %v1032 = vadd.f32 %v935, %v1031
      %v1033 = vpop.f32.mrb[0].mxu0
      %1034 = vmatprep.mubr.bf16.mxu0 0
      %1035 = vmatmul.mubr.bf16.gmra.mrb[0].mxu0 %v270
      %v1036 = vpop.f32.mrb[0].mxu0
      %v1037 = vadd.f32 %v940, %v1036
      %v1038 = vpop.f32.mrb[0].mxu0
      %v1039 = vpop.f32.mrb[0].mxu0
      %v1040 = vadd.f32 %v943, %v1039
      %v1041 = vpop.f32.mrb[0].mxu0
      %1042 = vdwg.mxu0
      %v1043 = vld [vmem:[%s3] sm:$0xf]
      %v1044 = vld [vmem:[%s3 + $0x4] sm:$0xf]
      %v1045 = vld [vmem:[%s3 + $0x8] sm:$0xf]
      %v1046 = vld [vmem:[%s3 + $0xc] sm:$0xf]
      %v1047 = vld [vmem:[%s3 + $0x10] sm:$0xf]
      %v1048 = vld [vmem:[%s3 + $0x14] sm:$0xf]
      %v1049 = vld [vmem:[%s3 + $0x18] sm:$0xf]
      %v1050 = vld [vmem:[%s3 + $0x1c] sm:$0xf]
      %v1051 = vld [vmem:[%s3 + $0x20] sm:$0xf]
      %v1052 = vld [vmem:[%s3 + $0x24] sm:$0xf]
      %v1053 = vld [vmem:[%s3 + $0x28] sm:$0xf]
      %v1054 = vld [vmem:[%s3 + $0x2c] sm:$0xf]
      %v1055 = vld [vmem:[%s3 + $0x30] sm:$0xf]
      %v1056 = vld [vmem:[%s3 + $0x34] sm:$0xf]
      %v1057 = vld [vmem:[%s3 + $0x38] sm:$0xf]
      %v1058 = vld [vmem:[%s3 + $0x3c] sm:$0xf]
      %v1059 = vld [vmem:[%s3 + $0x40] sm:$0xf]
      %v1060 = vld [vmem:[%s3 + $0x44] sm:$0xf]
      %v1061 = vld [vmem:[%s3 + $0x48] sm:$0xf]
      %v1062 = vld [vmem:[%s3 + $0x4c] sm:$0xf]
      %v1063 = vld [vmem:[%s3 + $0x50] sm:$0xf]
      %v1064 = vld [vmem:[%s3 + $0x54] sm:$0xf]
      %v1065 = vld [vmem:[%s3 + $0x58] sm:$0xf]
      %v1066 = vld [vmem:[%s3 + $0x5c] sm:$0xf]
      %v1067 = vld [vmem:[%s3 + $0x60] sm:$0xf]
      %v1068 = vld [vmem:[%s3 + $0x64] sm:$0xf]
      %v1069 = vld [vmem:[%s3 + $0x68] sm:$0xf]
      %v1070 = vld [vmem:[%s3 + $0x6c] sm:$0xf]
      %v1071 = vld [vmem:[%s3 + $0x70] sm:$0xf]
      %v1072 = vld [vmem:[%s3 + $0x74] sm:$0xf]
      %v1073 = vld [vmem:[%s3 + $0x78] sm:$0xf]
      %v1074 = vld [vmem:[%s3 + $0x7c] sm:$0xf]
      %v1075 = vld [vmem:[%s3 + $0x80] sm:$0xf]
      %v1076 = vld [vmem:[%s3 + $0x84] sm:$0xf]
      %v1077 = vld [vmem:[%s3 + $0x88] sm:$0xf]
      %v1078 = vld [vmem:[%s3 + $0x8c] sm:$0xf]
      %v1079 = vld [vmem:[%s3 + $0x90] sm:$0xf]
      %v1080 = vld [vmem:[%s3 + $0x94] sm:$0xf]
      %v1081 = vld [vmem:[%s3 + $0x98] sm:$0xf]
      %v1082 = vld [vmem:[%s3 + $0x9c] sm:$0xf]
      %v1083 = vld [vmem:[%s3 + $0xa0] sm:$0xf]
      %v1084 = vld [vmem:[%s3 + $0xa4] sm:$0xf]
      %v1085 = vld [vmem:[%s3 + $0xa8] sm:$0xf]
      %v1086 = vld [vmem:[%s3 + $0xac] sm:$0xf]
      %v1087 = vld [vmem:[%s3 + $0xb0] sm:$0xf]
      %v1088 = vld [vmem:[%s3 + $0xb4] sm:$0xf]
      %v1089 = vld [vmem:[%s3 + $0xb8] sm:$0xf]
      %v1090 = vld [vmem:[%s3 + $0xbc] sm:$0xf]
      %v1139 = vunpack.c.l.b16 %v1043
      %v1140 = vunpack.c.l.b16 %v1044
      %v1141 = vunpack.c.l.b16 %v1045
      %v1142 = vunpack.c.l.b16 %v1046
      %v1143 = vunpack.c.l.b16 %v1047
      %v1144 = vunpack.c.l.b16 %v1048
      %v1145 = vunpack.c.l.b16 %v1049
      %v1146 = vunpack.c.l.b16 %v1050
      %v1147 = vunpack.c.l.b16 %v1051
      %v1148 = vunpack.c.l.b16 %v1052
      %v1149 = vunpack.c.l.b16 %v1053
      %v1150 = vunpack.c.l.b16 %v1054
      %v1151 = vunpack.c.l.b16 %v1055
      %v1152 = vunpack.c.l.b16 %v1056
      %v1153 = vunpack.c.l.b16 %v1057
      %v1154 = vunpack.c.l.b16 %v1058
      %v1155 = vunpack.c.l.b16 %v1059
      %v1156 = vunpack.c.l.b16 %v1060
      %v1157 = vunpack.c.l.b16 %v1061
      %v1158 = vunpack.c.l.b16 %v1062
      %v1159 = vunpack.c.l.b16 %v1063
      %v1160 = vunpack.c.l.b16 %v1064
      %v1161 = vunpack.c.l.b16 %v1065
      %v1162 = vunpack.c.l.b16 %v1066
      %v1163 = vunpack.c.l.b16 %v1067
      %v1164 = vunpack.c.l.b16 %v1068
      %v1165 = vunpack.c.l.b16 %v1069
      %v1166 = vunpack.c.l.b16 %v1070
      %v1167 = vunpack.c.l.b16 %v1071
      %v1168 = vunpack.c.l.b16 %v1072
      %v1169 = vunpack.c.l.b16 %v1073
      %v1170 = vunpack.c.l.b16 %v1074
      %v1171 = vunpack.c.l.b16 %v1075
      %v1172 = vunpack.c.l.b16 %v1076
      %v1173 = vunpack.c.l.b16 %v1077
      %v1174 = vunpack.c.l.b16 %v1078
      %v1175 = vunpack.c.l.b16 %v1079
      %v1176 = vunpack.c.l.b16 %v1080
      %v1177 = vunpack.c.l.b16 %v1081
      %v1178 = vunpack.c.l.b16 %v1082
      %v1179 = vunpack.c.l.b16 %v1083
      %v1180 = vunpack.c.l.b16 %v1084
      %v1181 = vunpack.c.l.b16 %v1085
      %v1182 = vunpack.c.l.b16 %v1086
      %v1183 = vunpack.c.l.b16 %v1087
      %v1184 = vunpack.c.l.b16 %v1088
      %v1185 = vunpack.c.l.b16 %v1089
      %v1186 = vunpack.c.l.b16 %v1090
      %v1187 = vpack.c.b16 %v1140, %v1139
      %v1188 = vpack.c.b16 %v1142, %v1141
      %v1189 = vpack.c.b16 %v1144, %v1143
      %v1190 = vpack.c.b16 %v1146, %v1145
      %v1191 = vpack.c.b16 %v1148, %v1147
      %v1192 = vpack.c.b16 %v1150, %v1149
      %v1193 = vpack.c.b16 %v1152, %v1151
      %v1194 = vpack.c.b16 %v1154, %v1153
      %v1195 = vpack.c.b16 %v1156, %v1155
      %v1196 = vpack.c.b16 %v1158, %v1157
      %v1197 = vpack.c.b16 %v1160, %v1159
      %v1198 = vpack.c.b16 %v1162, %v1161
      %v1199 = vpack.c.b16 %v1164, %v1163
      %v1200 = vpack.c.b16 %v1166, %v1165
      %v1201 = vpack.c.b16 %v1168, %v1167
      %v1202 = vpack.c.b16 %v1170, %v1169
      %v1203 = vpack.c.b16 %v1172, %v1171
      %v1204 = vpack.c.b16 %v1174, %v1173
      %v1205 = vpack.c.b16 %v1176, %v1175
      %v1206 = vpack.c.b16 %v1178, %v1177
      %v1207 = vpack.c.b16 %v1180, %v1179
      %v1208 = vpack.c.b16 %v1182, %v1181
      %v1209 = vpack.c.b16 %v1184, %v1183
      %v1210 = vpack.c.b16 %v1186, %v1185
      %1235 = vmatprep.subr.bf16.mxu0 0
      %1236 = vmatpush1.bf16.msra.mxu0 %v1187
      %1237 = vmatprep.subr.bf16.mxu0 0
      %1238 = vmatpush1.bf16.msra.mxu0 %v1188
      %1239 = vmatprep.subr.bf16.mxu0 0
      %1240 = vmatpush1.bf16.msra.mxu0 %v1189
      %1241 = vmatprep.subr.bf16.mxu0 0
      %1242 = vmatpush1.bf16.msra.mxu0 %v1190
      %1243 = vmatprep.subr.bf16.mxu0 0
      %1244 = vmatpush1.bf16.msra.mxu0 %v1191
      %1245 = vmatprep.subr.bf16.mxu0 0
      %1246 = vmatpush1.bf16.msra.mxu0 %v1192
      %1247 = vmatprep.subr.bf16.mxu0 0
      %1248 = vmatpush1.bf16.msra.mxu0 %v1193
      %1249 = vmatprep.subr.bf16.mxu0 0
      %1250 = vmatpush1.bf16.msra.mxu0 %v1194
      %1251 = vmatprep.subr.bf16.mxu0 0
      %1252 = vmatpush1.bf16.msra.mxu0 %v1195
      %1253 = vmatprep.subr.bf16.mxu0 0
      %1254 = vmatpush1.bf16.msra.mxu0 %v1196
      %1255 = vmatprep.subr.bf16.mxu0 0
      %1256 = vmatpush1.bf16.msra.mxu0 %v1197
      %1257 = vmatprep.subr.bf16.mxu0 0
      %1258 = vmatpush1.bf16.msra.mxu0 %v1198
      %1259 = vmatprep.subr.bf16.mxu0 0
      %1260 = vmatpush1.bf16.msra.mxu0 %v1199
      %1261 = vmatprep.subr.bf16.mxu0 0
      %1262 = vmatpush1.bf16.msra.mxu0 %v1200
      %1263 = vmatprep.subr.bf16.mxu0 0
      %1264 = vmatpush1.bf16.msra.mxu0 %v1201
      %1265 = vmatprep.subr.bf16.mxu0 0
      %1266 = vmatpush1.bf16.msra.mxu0 %v1202
      %1267 = vmatprep.mubr.bf16.mxu0 %v248
      %1268 = vmatmul.mubr.bf16.gmra.mrb[0].mxu0 %v247
      %v1269 = vpop.f32.mrb[0].mxu0
      %v1270 = vadd.f32 0.0, %v1269
      %v1271 = vpop.f32.mrb[0].mxu0
      %v1272 = vpop.f32.mrb[0].mxu0
      %v1273 = vadd.f32 0.0, %v1272
      %v1274 = vpop.f32.mrb[0].mxu0
      %1275 = vmatprep.mubr.bf16.mxu0 %v251
      %1276 = vmatmul.mubr.bf16.gmra.mrb[0].mxu0 %v250
      %v1277 = vpop.f32.mrb[0].mxu0
      %v1278 = vadd.f32 0.0, %v1277
      %v1279 = vpop.f32.mrb[0].mxu0
      %v1280 = vpop.f32.mrb[0].mxu0
      %v1281 = vadd.f32 0.0, %v1280
      %v1282 = vpop.f32.mrb[0].mxu0
      %1283 = vmatprep.mubr.bf16.mxu0 %v254
      %1284 = vmatmul.mubr.bf16.gmra.mrb[0].mxu0 %v253
      %v1285 = vpop.f32.mrb[0].mxu0
      %v1286 = vadd.f32 0.0, %v1285
      %v1287 = vpop.f32.mrb[0].mxu0
      %v1288 = vpop.f32.mrb[0].mxu0
      %v1289 = vadd.f32 0.0, %v1288
      %v1290 = vpop.f32.mrb[0].mxu0
      %1291 = vmatprep.mubr.bf16.mxu0 %v257
      %1292 = vmatmul.mubr.bf16.gmra.mrb[0].mxu0 %v256
      %v1293 = vpop.f32.mrb[0].mxu0
      %v1294 = vadd.f32 0.0, %v1293
      %v1295 = vpop.f32.mrb[0].mxu0
      %v1296 = vpop.f32.mrb[0].mxu0
      %v1297 = vadd.f32 0.0, %v1296
      %v1298 = vpop.f32.mrb[0].mxu0
      %1299 = vmatprep.mubr.bf16.mxu0 %v260
      %1300 = vmatmul.mubr.bf16.gmra.mrb[0].mxu0 %v259
      %v1301 = vpop.f32.mrb[0].mxu0
      %v1302 = vadd.f32 0.0, %v1301
      %v1303 = vpop.f32.mrb[0].mxu0
      %v1304 = vpop.f32.mrb[0].mxu0
      %v1305 = vadd.f32 0.0, %v1304
      %v1306 = vpop.f32.mrb[0].mxu0
      %1307 = vmatprep.mubr.bf16.mxu0 %v263
      %1308 = vmatmul.mubr.bf16.gmra.mrb[0].mxu0 %v262
      %v1309 = vpop.f32.mrb[0].mxu0
      %v1310 = vadd.f32 0.0, %v1309
      %v1311 = vpop.f32.mrb[0].mxu0
      %v1312 = vpop.f32.mrb[0].mxu0
      %v1313 = vadd.f32 0.0, %v1312
      %v1314 = vpop.f32.mrb[0].mxu0
      %1315 = vmatprep.mubr.bf16.mxu0 %v266
      %1316 = vmatmul.mubr.bf16.gmra.mrb[0].mxu0 %v265
      %v1317 = vpop.f32.mrb[0].mxu0
      %v1318 = vadd.f32 0.0, %v1317
      %v1319 = vpop.f32.mrb[0].mxu0
      %v1320 = vpop.f32.mrb[0].mxu0
      %v1321 = vadd.f32 0.0, %v1320
      %v1322 = vpop.f32.mrb[0].mxu0
      %1323 = vmatprep.mubr.bf16.mxu0 %v269
      %1324 = vmatmul.mubr.bf16.gmra.mrb[0].mxu0 %v268
      %v1325 = vpop.f32.mrb[0].mxu0
      %v1326 = vadd.f32 0.0, %v1325
      %v1327 = vpop.f32.mrb[0].mxu0
      %v1328 = vpop.f32.mrb[0].mxu0
      %v1329 = vadd.f32 0.0, %v1328
      %v1330 = vpop.f32.mrb[0].mxu0
      %1331 = vdwg.mxu0
      %1332 = vmatprep.subr.bf16.mxu0 0
      %1333 = vmatpush1.bf16.msra.mxu0 %v1203
      %1334 = vmatprep.subr.bf16.mxu0 0
      %1335 = vmatpush1.bf16.msra.mxu0 %v1204
      %1336 = vmatprep.subr.bf16.mxu0 0
      %1337 = vmatpush1.bf16.msra.mxu0 %v1205
      %1338 = vmatprep.subr.bf16.mxu0 0
      %1339 = vmatpush1.bf16.msra.mxu0 %v1206
      %1340 = vmatprep.subr.bf16.mxu0 0
      %1341 = vmatpush1.bf16.msra.mxu0 %v1207
      %1342 = vmatprep.subr.bf16.mxu0 0
      %1343 = vmatpush1.bf16.msra.mxu0 %v1208
      %1344 = vmatprep.subr.bf16.mxu0 0
      %1345 = vmatpush1.bf16.msra.mxu0 %v1209
      %1346 = vmatprep.subr.bf16.mxu0 0
      %1347 = vmatpush1.bf16.msra.mxu0 %v1210
      %1348 = vmatprep.subr.bf16.mxu0 0
      %1349 = vmatpush1.bf16.msra.mxu0 0
      %1350 = vmatprep.subr.bf16.mxu0 0
      %1351 = vmatpush1.bf16.msra.mxu0 0
      %1352 = vmatprep.subr.bf16.mxu0 0
      %1353 = vmatpush1.bf16.msra.mxu0 0
      %1354 = vmatprep.subr.bf16.mxu0 0
      %1355 = vmatpush1.bf16.msra.mxu0 0
      %1356 = vmatprep.subr.bf16.mxu0 0
      %1357 = vmatpush1.bf16.msra.mxu0 0
      %1358 = vmatprep.subr.bf16.mxu0 0
      %1359 = vmatpush1.bf16.msra.mxu0 0
      %1360 = vmatprep.subr.bf16.mxu0 0
      %1361 = vmatpush1.bf16.msra.mxu0 0
      %1362 = vmatprep.subr.bf16.mxu0 0
      %1363 = vmatpush1.bf16.msra.mxu0 0
      %1364 = vmatprep.mubr.bf16.mxu0 0
      %1365 = vmatmul.mubr.bf16.gmra.mrb[0].mxu0 %v249
      %v1366 = vpop.f32.mrb[0].mxu0
      %v1367 = vadd.f32 %v1270, %v1366
      %v1368 = vpop.f32.mrb[0].mxu0
      %v1369 = vpop.f32.mrb[0].mxu0
      %v1370 = vadd.f32 %v1273, %v1369
      %v1371 = vpop.f32.mrb[0].mxu0
      %1372 = vmatprep.mubr.bf16.mxu0 0
      %1373 = vmatmul.mubr.bf16.gmra.mrb[0].mxu0 %v252
      %v1374 = vpop.f32.mrb[0].mxu0
      %v1375 = vadd.f32 %v1278, %v1374
      %v1376 = vpop.f32.mrb[0].mxu0
      %v1377 = vpop.f32.mrb[0].mxu0
      %v1378 = vadd.f32 %v1281, %v1377
      %v1379 = vpop.f32.mrb[0].mxu0
      %1380 = vmatprep.mubr.bf16.mxu0 0
      %1381 = vmatmul.mubr.bf16.gmra.mrb[0].mxu0 %v255
      %v1382 = vpop.f32.mrb[0].mxu0
      %v1383 = vadd.f32 %v1286, %v1382
      %v1384 = vpop.f32.mrb[0].mxu0
      %v1385 = vpop.f32.mrb[0].mxu0
      %v1386 = vadd.f32 %v1289, %v1385
      %v1387 = vpop.f32.mrb[0].mxu0
      %1388 = vmatprep.mubr.bf16.mxu0 0
      %1389 = vmatmul.mubr.bf16.gmra.mrb[0].mxu0 %v258
      %v1390 = vpop.f32.mrb[0].mxu0
      %v1391 = vadd.f32 %v1294, %v1390
      %v1392 = vpop.f32.mrb[0].mxu0
      %v1393 = vpop.f32.mrb[0].mxu0
      %v1394 = vadd.f32 %v1297, %v1393
      %v1395 = vpop.f32.mrb[0].mxu0
      %1396 = vmatprep.mubr.bf16.mxu0 0
      %1397 = vmatmul.mubr.bf16.gmra.mrb[0].mxu0 %v261
      %v1398 = vpop.f32.mrb[0].mxu0
      %v1399 = vadd.f32 %v1302, %v1398
      %v1400 = vpop.f32.mrb[0].mxu0
      %v1401 = vpop.f32.mrb[0].mxu0
      %v1402 = vadd.f32 %v1305, %v1401
      %v1403 = vpop.f32.mrb[0].mxu0
      %1404 = vmatprep.mubr.bf16.mxu0 0
      %1405 = vmatmul.mubr.bf16.gmra.mrb[0].mxu0 %v264
      %v1406 = vpop.f32.mrb[0].mxu0
      %v1407 = vadd.f32 %v1310, %v1406
      %v1408 = vpop.f32.mrb[0].mxu0
      %v1409 = vpop.f32.mrb[0].mxu0
      %v1410 = vadd.f32 %v1313, %v1409
      %v1411 = vpop.f32.mrb[0].mxu0
      %1412 = vmatprep.mubr.bf16.mxu0 0
      %1413 = vmatmul.mubr.bf16.gmra.mrb[0].mxu0 %v267
      %v1414 = vpop.f32.mrb[0].mxu0
      %v1415 = vadd.f32 %v1318, %v1414
      %v1416 = vpop.f32.mrb[0].mxu0
      %v1417 = vpop.f32.mrb[0].mxu0
      %v1418 = vadd.f32 %v1321, %v1417
      %v1419 = vpop.f32.mrb[0].mxu0
      %1420 = vmatprep.mubr.bf16.mxu0 0
      %1421 = vmatmul.mubr.bf16.gmra.mrb[0].mxu0 %v270
      %v1422 = vpop.f32.mrb[0].mxu0
      %v1423 = vadd.f32 %v1326, %v1422
      %v1424 = vpop.f32.mrb[0].mxu0
      %v1425 = vpop.f32.mrb[0].mxu0
      %v1426 = vadd.f32 %v1329, %v1425
      %v1427 = vpop.f32.mrb[0].mxu0
      %1428 = vdwg.mxu0
      %v1429 = vmul.f32 %v595, 0.05103104
      %v1430 = vmul.f32 %v598, 0.05103104
      %v1431 = vmul.f32 %v603, 0.05103104
      %v1432 = vmul.f32 %v606, 0.05103104
      %v1433 = vmul.f32 %v611, 0.05103104
      %v1434 = vmul.f32 %v614, 0.05103104
      %v1435 = vmul.f32 %v619, 0.05103104
      %v1436 = vmul.f32 %v622, 0.05103104
      %v1437 = vmul.f32 %v627, 0.05103104
      %v1438 = vmul.f32 %v630, 0.05103104
      %v1439 = vmul.f32 %v635, 0.05103104
      %v1440 = vmul.f32 %v638, 0.05103104
      %v1441 = vmul.f32 %v643, 0.05103104
      %v1442 = vmul.f32 %v646, 0.05103104
      %v1443 = vmul.f32 %v651, 0.05103104
      %v1444 = vmul.f32 %v654, 0.05103104
      %v1445 = vpack.c.bf16 %v1430, %v1429
      %v1446 = vpack.c.bf16 %v1432, %v1431
      %v1447 = vpack.c.bf16 %v1434, %v1433
      %v1448 = vpack.c.bf16 %v1436, %v1435
      %v1449 = vpack.c.bf16 %v1438, %v1437
      %v1450 = vpack.c.bf16 %v1440, %v1439
      %v1451 = vpack.c.bf16 %v1442, %v1441
      %v1452 = vpack.c.bf16 %v1444, %v1443
      %vm1453 = vcmask 523264
      %1454 = vst.msk [vmem:[#allocation2] sm:$0xff] %vm1453, %v1445
      %1455 = vst.msk [vmem:[#allocation2 + $0x8] sm:$0xff] %vm1453, %v1446
      %1456 = vst.msk [vmem:[#allocation2 + $0x10] sm:$0xff] %vm1453, %v1447
      %1457 = vst.msk [vmem:[#allocation2 + $0x18] sm:$0xff] %vm1453, %v1448
      %1458 = vst.msk [vmem:[#allocation2 + $0x20] sm:$0xff] %vm1453, %v1449
      %1459 = vst.msk [vmem:[#allocation2 + $0x28] sm:$0xff] %vm1453, %v1450
      %1460 = vst.msk [vmem:[#allocation2 + $0x30] sm:$0xff] %vm1453, %v1451
      %1461 = vst.msk [vmem:[#allocation2 + $0x38] sm:$0xff] %vm1453, %v1452
      %v1462 = vpack.c.bf16 %v984, %v981
      %v1463 = vpack.c.bf16 %v992, %v989
      %v1464 = vpack.c.bf16 %v1000, %v997
      %v1465 = vpack.c.bf16 %v1008, %v1005
      %v1466 = vpack.c.bf16 %v1016, %v1013
      %v1467 = vpack.c.bf16 %v1024, %v1021
      %v1468 = vpack.c.bf16 %v1032, %v1029
      %v1469 = vpack.c.bf16 %v1040, %v1037
      %1470 = vst.msk [vmem:[#allocation3] sm:$0xff] %vm1453, %v1462
      %1471 = vst.msk [vmem:[#allocation3 + $0x8] sm:$0xff] %vm1453, %v1463
      %1472 = vst.msk [vmem:[#allocation3 + $0x10] sm:$0xff] %vm1453, %v1464
      %1473 = vst.msk [vmem:[#allocation3 + $0x18] sm:$0xff] %vm1453, %v1465
      %1474 = vst.msk [vmem:[#allocation3 + $0x20] sm:$0xff] %vm1453, %v1466
      %1475 = vst.msk [vmem:[#allocation3 + $0x28] sm:$0xff] %vm1453, %v1467
      %1476 = vst.msk [vmem:[#allocation3 + $0x30] sm:$0xff] %vm1453, %v1468
      %1477 = vst.msk [vmem:[#allocation3 + $0x38] sm:$0xff] %vm1453, %v1469
      %v1478 = vpack.c.bf16 %v1370, %v1367
      %v1479 = vpack.c.bf16 %v1378, %v1375
      %v1480 = vpack.c.bf16 %v1386, %v1383
      %v1481 = vpack.c.bf16 %v1394, %v1391
      %v1482 = vpack.c.bf16 %v1402, %v1399
      %v1483 = vpack.c.bf16 %v1410, %v1407
      %v1484 = vpack.c.bf16 %v1418, %v1415
      %v1485 = vpack.c.bf16 %v1426, %v1423
      %1486 = vst.msk [vmem:[#allocation4] sm:$0xff] %vm1453, %v1478
      %1487 = vst.msk [vmem:[#allocation4 + $0x8] sm:$0xff] %vm1453, %v1479
      %1488 = vst.msk [vmem:[#allocation4 + $0x10] sm:$0xff] %vm1453, %v1480
      %1489 = vst.msk [vmem:[#allocation4 + $0x18] sm:$0xff] %vm1453, %v1481
      %1490 = vst.msk [vmem:[#allocation4 + $0x20] sm:$0xff] %vm1453, %v1482
      %1491 = vst.msk [vmem:[#allocation4 + $0x28] sm:$0xff] %vm1453, %v1483
      %1492 = vst.msk [vmem:[#allocation4 + $0x30] sm:$0xff] %vm1453, %v1484
      %1493 = vst.msk [vmem:[#allocation4 + $0x38] sm:$0xff] %vm1453, %v1485
      %v1494 = vld [vmem:[#allocation2] sm:$0xff]
      %v1495 = vld [vmem:[#allocation2 + $0x8] sm:$0xff]
      %v1496 = vld [vmem:[#allocation2 + $0x10] sm:$0xff]
      %v1497 = vld [vmem:[#allocation2 + $0x18] sm:$0xff]
      %v1498 = vld [vmem:[#allocation2 + $0x20] sm:$0xff]
      %v1499 = vld [vmem:[#allocation2 + $0x28] sm:$0xff]
      %v1500 = vld [vmem:[#allocation2 + $0x30] sm:$0xff]
      %v1501 = vld [vmem:[#allocation2 + $0x38] sm:$0xff]
      %v1502 = vld [vmem:[#allocation3] sm:$0xff]
      %v1503 = vld [vmem:[#allocation3 + $0x8] sm:$0xff]
      %v1504 = vld [vmem:[#allocation3 + $0x10] sm:$0xff]
      %v1505 = vld [vmem:[#allocation3 + $0x18] sm:$0xff]
      %v1506 = vld [vmem:[#allocation3 + $0x20] sm:$0xff]
      %v1507 = vld [vmem:[#allocation3 + $0x28] sm:$0xff]
      %v1508 = vld [vmem:[#allocation3 + $0x30] sm:$0xff]
      %v1509 = vld [vmem:[#allocation3 + $0x38] sm:$0xff]
      %v1510 = vld [vmem:[#allocation4] sm:$0xff]
      %v1511 = vld [vmem:[#allocation4 + $0x8] sm:$0xff]
      %v1512 = vld [vmem:[#allocation4 + $0x10] sm:$0xff]
      %v1513 = vld [vmem:[#allocation4 + $0x18] sm:$0xff]
      %v1514 = vld [vmem:[#allocation4 + $0x20] sm:$0xff]
      %v1515 = vld [vmem:[#allocation4 + $0x28] sm:$0xff]
      %v1516 = vld [vmem:[#allocation4 + $0x30] sm:$0xff]
      %v1517 = vld [vmem:[#allocation4 + $0x38] sm:$0xff]
      %v1519 = vsel %vm1453, %v1494, 0
      %v1522 = vsel %vm1453, %v1495, 0
      %v1525 = vsel %vm1453, %v1496, 0
      %v1528 = vsel %vm1453, %v1497, 0
      %v1531 = vsel %vm1453, %v1498, 0
      %v1534 = vsel %vm1453, %v1499, 0
      %v1537 = vsel %vm1453, %v1500, 0
      %v1540 = vsel %vm1453, %v1501, 0
      %v1543 = vsel %vm1453, %v1502, 0
      %v1546 = vsel %vm1453, %v1503, 0
      %v1549 = vsel %vm1453, %v1504, 0
      %v1552 = vsel %vm1453, %v1505, 0
      %v1555 = vsel %vm1453, %v1506, 0
      %v1558 = vsel %vm1453, %v1507, 0
      %v1561 = vsel %vm1453, %v1508, 0
      %v1564 = vsel %vm1453, %v1509, 0
      %1566 = vmatprep.subr.bf16.mxu0 0
      %1567 = vmatpush1.bf16.xpose.msra.mxu0 %v1543
      %1568 = vmatprep.subr.bf16.mxu0 0
      %1569 = vmatpush1.bf16.xpose.msra.mxu0 %v1546
      %1570 = vmatprep.subr.bf16.mxu0 0
      %1571 = vmatpush1.bf16.xpose.msra.mxu0 %v1549
      %1572 = vmatprep.subr.bf16.mxu0 0
      %1573 = vmatpush1.bf16.xpose.msra.mxu0 %v1552
      %1574 = vmatprep.subr.bf16.mxu0 0
      %1575 = vmatpush1.bf16.xpose.msra.mxu0 %v1555
      %1576 = vmatprep.subr.bf16.mxu0 0
      %1577 = vmatpush1.bf16.xpose.msra.mxu0 %v1558
      %1578 = vmatprep.subr.bf16.mxu0 0
      %1579 = vmatpush1.bf16.xpose.msra.mxu0 %v1561
      %1580 = vmatprep.subr.bf16.mxu0 0
      %1581 = vmatpush1.bf16.xpose.msra.mxu0 %v1564
      %1582 = vmatprep.subr.bf16.mxu0 0
      %1583 = vmatpush1.bf16.xpose.msra.mxu0 0
      %1584 = vmatprep.subr.bf16.mxu0 0
      %1585 = vmatpush1.bf16.xpose.msra.mxu0 0
      %1586 = vmatprep.subr.bf16.mxu0 0
      %1587 = vmatpush1.bf16.xpose.msra.mxu0 0
      %1588 = vmatprep.subr.bf16.mxu0 0
      %1589 = vmatpush1.bf16.xpose.msra.mxu0 0
      %1590 = vmatprep.subr.bf16.mxu0 0
      %1591 = vmatpush1.bf16.xpose.msra.mxu0 0
      %1592 = vmatprep.subr.bf16.mxu0 0
      %1593 = vmatpush1.bf16.xpose.msra.mxu0 0
      %1594 = vmatprep.subr.bf16.mxu0 0
      %1595 = vmatpush1.bf16.xpose.msra.mxu0 0
      %1596 = vmatprep.subr.bf16.mxu0 0
      %1597 = vmatpush1.bf16.xpose.msra.mxu0 0
      %1598 = vmatprep.mubr.bf16.mxu0 0
      %1599 = vmatmul.mubr.bf16.gmra.mrb[0].mxu0 %v1519
      %v1600 = vpop.f32.mrb[0].mxu0
      %v1601 = vadd.f32 0.0, %v1600
      %v1602 = vpop.f32.mrb[0].mxu0
      %v1603 = vpop.f32.mrb[0].mxu0
      %v1604 = vadd.f32 0.0, %v1603
      %v1605 = vpop.f32.mrb[0].mxu0
      %1606 = vmatprep.mubr.bf16.mxu0 0
      %1607 = vmatmul.mubr.bf16.gmra.mrb[0].mxu0 %v1522
      %v1608 = vpop.f32.mrb[0].mxu0
      %v1609 = vadd.f32 0.0, %v1608
      %v1610 = vpop.f32.mrb[0].mxu0
      %v1611 = vpop.f32.mrb[0].mxu0
      %v1612 = vadd.f32 0.0, %v1611
      %v1613 = vpop.f32.mrb[0].mxu0
      %1614 = vmatprep.mubr.bf16.mxu0 0
      %1615 = vmatmul.mubr.bf16.gmra.mrb[0].mxu0 %v1525
      %v1616 = vpop.f32.mrb[0].mxu0
      %v1617 = vadd.f32 0.0, %v1616
      %v1618 = vpop.f32.mrb[0].mxu0
      %v1619 = vpop.f32.mrb[0].mxu0
      %v1620 = vadd.f32 0.0, %v1619
      %v1621 = vpop.f32.mrb[0].mxu0
      %1622 = vmatprep.mubr.bf16.mxu0 0
      %1623 = vmatmul.mubr.bf16.gmra.mrb[0].mxu0 %v1528
      %v1624 = vpop.f32.mrb[0].mxu0
      %v1625 = vadd.f32 0.0, %v1624
      %v1626 = vpop.f32.mrb[0].mxu0
      %v1627 = vpop.f32.mrb[0].mxu0
      %v1628 = vadd.f32 0.0, %v1627
      %v1629 = vpop.f32.mrb[0].mxu0
      %1630 = vmatprep.mubr.bf16.mxu0 0
      %1631 = vmatmul.mubr.bf16.gmra.mrb[0].mxu0 %v1531
      %v1632 = vpop.f32.mrb[0].mxu0
      %v1633 = vadd.f32 0.0, %v1632
      %v1634 = vpop.f32.mrb[0].mxu0
      %v1635 = vpop.f32.mrb[0].mxu0
      %v1636 = vadd.f32 0.0, %v1635
      %v1637 = vpop.f32.mrb[0].mxu0
      %1638 = vmatprep.mubr.bf16.mxu0 0
      %1639 = vmatmul.mubr.bf16.gmra.mrb[0].mxu0 %v1534
      %v1640 = vpop.f32.mrb[0].mxu0
      %v1641 = vadd.f32 0.0, %v1640
      %v1642 = vpop.f32.mrb[0].mxu0
      %v1643 = vpop.f32.mrb[0].mxu0
      %v1644 = vadd.f32 0.0, %v1643
      %v1645 = vpop.f32.mrb[0].mxu0
      %1646 = vmatprep.mubr.bf16.mxu0 0
      %1647 = vmatmul.mubr.bf16.gmra.mrb[0].mxu0 %v1537
      %v1648 = vpop.f32.mrb[0].mxu0
      %v1649 = vadd.f32 0.0, %v1648
      %v1650 = vpop.f32.mrb[0].mxu0
      %v1651 = vpop.f32.mrb[0].mxu0
      %v1652 = vadd.f32 0.0, %v1651
      %v1653 = vpop.f32.mrb[0].mxu0
      %1654 = vmatprep.mubr.bf16.mxu0 0
      %1655 = vmatmul.mubr.bf16.gmra.mrb[0].mxu0 %v1540
      %v1656 = vpop.f32.mrb[0].mxu0
      %v1657 = vadd.f32 0.0, %v1656
      %v1658 = vpop.f32.mrb[0].mxu0
      %v1659 = vpop.f32.mrb[0].mxu0
      %v1660 = vadd.f32 0.0, %v1659
      %v1661 = vpop.f32.mrb[0].mxu0
      %1662 = vdwg.mxu0
      %v1663 = vlaneseq
      %v1664 = vshrl.u32 %v1663, 7
      %v1665 = vadd.s32 %v1664, 8
      %v1666 = vadd.s32 %v1664, 16
      %v1667 = vadd.s32 %v1664, 24
      %v1668 = vadd.s32 %v1664, 32
      %v1669 = vadd.s32 %v1664, 40
      %v1670 = vadd.s32 %v1664, 48
      %v1671 = vadd.s32 %v1664, 56
      %v1672 = vadd.s32 %v1664, 64
      %v1673 = vadd.s32 %v1664, 72
      %v1674 = vadd.s32 %v1664, 80
      %v1675 = vadd.s32 %v1664, 88
      %v1676 = vadd.s32 %v1664, 96
      %v1677 = vadd.s32 %v1664, 104
      %v1678 = vadd.s32 %v1664, 112
      %v1679 = vadd.s32 %v1664, 120
      %v1680 = vlaneseq
      %v1681 = vand.u32 %v1680, 127
      %vm1682 = vcmp.le.s32.totalorder %v1681, %v1664
      %vm1683 = vcmp.le.s32.totalorder %v1681, %v1665
      %vm1684 = vcmp.le.s32.totalorder %v1681, %v1666
      %vm1685 = vcmp.le.s32.totalorder %v1681, %v1667
      %vm1686 = vcmp.le.s32.totalorder %v1681, %v1668
      %vm1687 = vcmp.le.s32.totalorder %v1681, %v1669
      %vm1688 = vcmp.le.s32.totalorder %v1681, %v1670
      %vm1689 = vcmp.le.s32.totalorder %v1681, %v1671
      %vm1690 = vcmp.le.s32.totalorder %v1681, %v1672
      %vm1691 = vcmp.le.s32.totalorder %v1681, %v1673
      %vm1692 = vcmp.le.s32.totalorder %v1681, %v1674
      %vm1693 = vcmp.le.s32.totalorder %v1681, %v1675
      %vm1694 = vcmp.le.s32.totalorder %v1681, %v1676
      %vm1695 = vcmp.le.s32.totalorder %v1681, %v1677
      %vm1696 = vcmp.le.s32.totalorder %v1681, %v1678
      %vm1697 = vcmp.le.s32.totalorder %v1681, %v1679
      %v1698 = vsel %vm1682, %v1601, -1e+30
      %v1699 = vsel %vm1683, %v1604, -1e+30
      %v1700 = vsel %vm1684, %v1609, -1e+30
      %v1701 = vsel %vm1685, %v1612, -1e+30
      %v1702 = vsel %vm1686, %v1617, -1e+30
      %v1703 = vsel %vm1687, %v1620, -1e+30
      %v1704 = vsel %vm1688, %v1625, -1e+30
      %v1705 = vsel %vm1689, %v1628, -1e+30
      %v1706 = vsel %vm1690, %v1633, -1e+30
      %v1707 = vsel %vm1691, %v1636, -1e+30
      %v1708 = vsel %vm1692, %v1641, -1e+30
      %v1709 = vsel %vm1693, %v1644, -1e+30
      %v1710 = vsel %vm1694, %v1649, -1e+30
      %v1711 = vsel %vm1695, %v1652, -1e+30
      %v1712 = vsel %vm1696, %v1657, -1e+30
      %v1713 = vsel %vm1697, %v1660, -1e+30
      %1714 = vmax.xlane.f32.xlu0 %v1698
      %v1715 = vpop.xlane.xlu0 %1714
      %1716 = vmax.xlane.f32.xlu0 %v1699
      %v1717 = vpop.xlane.xlu0 %1716
      %1718 = vmax.xlane.f32.xlu0 %v1700
      %v1719 = vpop.xlane.xlu0 %1718
      %1720 = vmax.xlane.f32.xlu0 %v1701
      %v1721 = vpop.xlane.xlu0 %1720
      %1722 = vmax.xlane.f32.xlu0 %v1702
      %v1723 = vpop.xlane.xlu0 %1722
      %1724 = vmax.xlane.f32.xlu0 %v1703
      %v1725 = vpop.xlane.xlu0 %1724
      %1726 = vmax.xlane.f32.xlu0 %v1704
      %v1727 = vpop.xlane.xlu0 %1726
      %1728 = vmax.xlane.f32.xlu0 %v1705
      %v1729 = vpop.xlane.xlu0 %1728
      %1730 = vmax.xlane.f32.xlu0 %v1706
      %v1731 = vpop.xlane.xlu0 %1730
      %1732 = vmax.xlane.f32.xlu0 %v1707
      %v1733 = vpop.xlane.xlu0 %1732
      %1734 = vmax.xlane.f32.xlu0 %v1708
      %v1735 = vpop.xlane.xlu0 %1734
      %1736 = vmax.xlane.f32.xlu0 %v1709
      %v1737 = vpop.xlane.xlu0 %1736
      %1738 = vmax.xlane.f32.xlu0 %v1710
      %v1739 = vpop.xlane.xlu0 %1738
      %1740 = vmax.xlane.f32.xlu0 %v1711
      %v1741 = vpop.xlane.xlu0 %1740
      %1742 = vmax.xlane.f32.xlu0 %v1712
      %v1743 = vpop.xlane.xlu0 %1742
      %1744 = vmax.xlane.f32.xlu0 %v1713
      %v1745 = vpop.xlane.xlu0 %1744
      %v1746 = vsub.f32 %v1698, %v1715
      %v1747 = vsub.f32 %v1699, %v1717
      %v1748 = vsub.f32 %v1700, %v1719
      %v1749 = vsub.f32 %v1701, %v1721
      %v1750 = vsub.f32 %v1702, %v1723
      %v1751 = vsub.f32 %v1703, %v1725
      %v1752 = vsub.f32 %v1704, %v1727
      %v1753 = vsub.f32 %v1705, %v1729
      %v1754 = vsub.f32 %v1706, %v1731
      %v1755 = vsub.f32 %v1707, %v1733
      %v1756 = vsub.f32 %v1708, %v1735
      %v1757 = vsub.f32 %v1709, %v1737
      %v1758 = vsub.f32 %v1710, %v1739
      %v1759 = vsub.f32 %v1711, %v1741
      %v1760 = vsub.f32 %v1712, %v1743
      %v1761 = vsub.f32 %v1713, %v1745
      %v1762 = vmul.f32 %v1746, 1.442695
      %v1763 = vpow.pop %v1762
      %v1764 = vmul.f32 %v1747, 1.442695
      %v1765 = vpow.pop %v1764
      %v1766 = vmul.f32 %v1748, 1.442695
      %v1767 = vpow.pop %v1766
      %v1768 = vmul.f32 %v1749, 1.442695
      %v1769 = vpow.pop %v1768
      %v1770 = vmul.f32 %v1750, 1.442695
      %v1771 = vpow.pop %v1770
      %v1772 = vmul.f32 %v1751, 1.442695
      %v1773 = vpow.pop %v1772
      %v1774 = vmul.f32 %v1752, 1.442695
      %v1775 = vpow.pop %v1774
      %v1776 = vmul.f32 %v1753, 1.442695
      %v1777 = vpow.pop %v1776
      %v1778 = vmul.f32 %v1754, 1.442695
      %v1779 = vpow.pop %v1778
      %v1780 = vmul.f32 %v1755, 1.442695
      %v1781 = vpow.pop %v1780
      %v1782 = vmul.f32 %v1756, 1.442695
      %v1783 = vpow.pop %v1782
      %v1784 = vmul.f32 %v1757, 1.442695
      %v1785 = vpow.pop %v1784
      %v1786 = vmul.f32 %v1758, 1.442695
      %v1787 = vpow.pop %v1786
      %v1788 = vmul.f32 %v1759, 1.442695
      %v1789 = vpow.pop %v1788
      %v1790 = vmul.f32 %v1760, 1.442695
      %v1791 = vpow.pop %v1790
      %v1792 = vmul.f32 %v1761, 1.442695
      %v1793 = vpow.pop %v1792
      %1794 = vadd.xlane.f32.xlu0 %v1763
      %v1795 = vpop.xlane.xlu0 %1794
      %1796 = vadd.xlane.f32.xlu0 %v1765
      %v1797 = vpop.xlane.xlu0 %1796
      %1798 = vadd.xlane.f32.xlu0 %v1767
      %v1799 = vpop.xlane.xlu0 %1798
      %1800 = vadd.xlane.f32.xlu0 %v1769
      %v1801 = vpop.xlane.xlu0 %1800
      %1802 = vadd.xlane.f32.xlu0 %v1771
      %v1803 = vpop.xlane.xlu0 %1802
      %1804 = vadd.xlane.f32.xlu0 %v1773
      %v1805 = vpop.xlane.xlu0 %1804
      %1806 = vadd.xlane.f32.xlu0 %v1775
      %v1807 = vpop.xlane.xlu0 %1806
      %1808 = vadd.xlane.f32.xlu0 %v1777
      %v1809 = vpop.xlane.xlu0 %1808
      %1810 = vadd.xlane.f32.xlu0 %v1779
      %v1811 = vpop.xlane.xlu0 %1810
      %1812 = vadd.xlane.f32.xlu0 %v1781
      %v1813 = vpop.xlane.xlu0 %1812
      %1814 = vadd.xlane.f32.xlu0 %v1783
      %v1815 = vpop.xlane.xlu0 %1814
      %1816 = vadd.xlane.f32.xlu0 %v1785
      %v1817 = vpop.xlane.xlu0 %1816
      %1818 = vadd.xlane.f32.xlu0 %v1787
      %v1819 = vpop.xlane.xlu0 %1818
      %1820 = vadd.xlane.f32.xlu0 %v1789
      %v1821 = vpop.xlane.xlu0 %1820
      %1822 = vadd.xlane.f32.xlu0 %v1791
      %v1823 = vpop.xlane.xlu0 %1822
      %1824 = vadd.xlane.f32.xlu0 %v1793
      %v1825 = vpop.xlane.xlu0 %1824
      %v1826 = vrcp.pop %v1795
      %v1827 = vrcp.pop %v1797
      %v1828 = vrcp.pop %v1799
      %v1829 = vrcp.pop %v1801
      %v1830 = vrcp.pop %v1803
      %v1831 = vrcp.pop %v1805
      %v1832 = vrcp.pop %v1807
      %v1833 = vrcp.pop %v1809
      %v1834 = vrcp.pop %v1811
      %v1835 = vrcp.pop %v1813
      %v1836 = vrcp.pop %v1815
      %v1837 = vrcp.pop %v1817
      %v1838 = vrcp.pop %v1819
      %v1839 = vrcp.pop %v1821
      %v1840 = vrcp.pop %v1823
      %v1841 = vrcp.pop %v1825
      %v1842 = vmul.f32 %v1763, %v1826
      %v1843 = vmul.f32 %v1765, %v1827
      %v1844 = vmul.f32 %v1767, %v1828
      %v1845 = vmul.f32 %v1769, %v1829
      %v1846 = vmul.f32 %v1771, %v1830
      %v1847 = vmul.f32 %v1773, %v1831
      %v1848 = vmul.f32 %v1775, %v1832
      %v1849 = vmul.f32 %v1777, %v1833
      %v1850 = vmul.f32 %v1779, %v1834
      %v1851 = vmul.f32 %v1781, %v1835
      %v1852 = vmul.f32 %v1783, %v1836
      %v1853 = vmul.f32 %v1785, %v1837
      %v1854 = vmul.f32 %v1787, %v1838
      %v1855 = vmul.f32 %v1789, %v1839
      %v1856 = vmul.f32 %v1791, %v1840
      %v1857 = vmul.f32 %v1793, %v1841
      %v1858 = vpack.c.bf16 %v1843, %v1842
      %v1859 = vpack.c.bf16 %v1845, %v1844
      %v1860 = vpack.c.bf16 %v1847, %v1846
      %v1861 = vpack.c.bf16 %v1849, %v1848
      %v1862 = vpack.c.bf16 %v1851, %v1850
      %v1863 = vpack.c.bf16 %v1853, %v1852
      %v1864 = vpack.c.bf16 %v1855, %v1854
      %v1865 = vpack.c.bf16 %v1857, %v1856
      %1866 = vmatprep.subr.bf16.mxu0 0
      %1867 = vmatpush1.bf16.msra.mxu0 %v1510
      %1868 = vmatprep.subr.bf16.mxu0 0
      %1869 = vmatpush1.bf16.msra.mxu0 %v1511
      %1870 = vmatprep.subr.bf16.mxu0 0
      %1871 = vmatpush1.bf16.msra.mxu0 %v1512
      %1872 = vmatprep.subr.bf16.mxu0 0
      %1873 = vmatpush1.bf16.msra.mxu0 %v1513
      %1874 = vmatprep.subr.bf16.mxu0 0
      %1875 = vmatpush1.bf16.msra.mxu0 %v1514
      %1876 = vmatprep.subr.bf16.mxu0 0
      %1877 = vmatpush1.bf16.msra.mxu0 %v1515
      %1878 = vmatprep.subr.bf16.mxu0 0
      %1879 = vmatpush1.bf16.msra.mxu0 %v1516
      %1880 = vmatprep.subr.bf16.mxu0 0
      %1881 = vmatpush1.bf16.msra.mxu0 %v1517
      %1882 = vmatprep.subr.bf16.mxu0 0
      %1883 = vmatpush1.bf16.msra.mxu0 0
      %1884 = vmatprep.subr.bf16.mxu0 0
      %1885 = vmatpush1.bf16.msra.mxu0 0
      %1886 = vmatprep.subr.bf16.mxu0 0
      %1887 = vmatpush1.bf16.msra.mxu0 0
      %1888 = vmatprep.subr.bf16.mxu0 0
      %1889 = vmatpush1.bf16.msra.mxu0 0
      %1890 = vmatprep.subr.bf16.mxu0 0
      %1891 = vmatpush1.bf16.msra.mxu0 0
      %1892 = vmatprep.subr.bf16.mxu0 0
      %1893 = vmatpush1.bf16.msra.mxu0 0
      %1894 = vmatprep.subr.bf16.mxu0 0
      %1895 = vmatpush1.bf16.msra.mxu0 0
      %1896 = vmatprep.subr.bf16.mxu0 0
      %1897 = vmatpush1.bf16.msra.mxu0 0
      %1898 = vmatprep.mubr.bf16.mxu0 0
      %1899 = vmatmul.mubr.bf16.gmra.mrb[0].mxu0 %v1858
      %v1900 = vpop.f32.mrb[0].mxu0
      %v1901 = vadd.f32 0.0, %v1900
      %v1902 = vpop.f32.mrb[0].mxu0
      %v1903 = vpop.f32.mrb[0].mxu0
      %v1904 = vadd.f32 0.0, %v1903
      %v1905 = vpop.f32.mrb[0].mxu0
      %1906 = vmatprep.mubr.bf16.mxu0 0
      %1907 = vmatmul.mubr.bf16.gmra.mrb[0].mxu0 %v1859
      %v1908 = vpop.f32.mrb[0].mxu0
      %v1909 = vadd.f32 0.0, %v1908
      %v1910 = vpop.f32.mrb[0].mxu0
      %v1911 = vpop.f32.mrb[0].mxu0
      %v1912 = vadd.f32 0.0, %v1911
      %v1913 = vpop.f32.mrb[0].mxu0
      %1914 = vmatprep.mubr.bf16.mxu0 0
      %1915 = vmatmul.mubr.bf16.gmra.mrb[0].mxu0 %v1860
      %v1916 = vpop.f32.mrb[0].mxu0
      %v1917 = vadd.f32 0.0, %v1916
      %v1918 = vpop.f32.mrb[0].mxu0
      %v1919 = vpop.f32.mrb[0].mxu0
      %v1920 = vadd.f32 0.0, %v1919
      %v1921 = vpop.f32.mrb[0].mxu0
      %1922 = vmatprep.mubr.bf16.mxu0 0
      %1923 = vmatmul.mubr.bf16.gmra.mrb[0].mxu0 %v1861
      %v1924 = vpop.f32.mrb[0].mxu0
      %v1925 = vadd.f32 0.0, %v1924
      %v1926 = vpop.f32.mrb[0].mxu0
      %v1927 = vpop.f32.mrb[0].mxu0
      %v1928 = vadd.f32 0.0, %v1927
      %v1929 = vpop.f32.mrb[0].mxu0
      %1930 = vmatprep.mubr.bf16.mxu0 0
      %1931 = vmatmul.mubr.bf16.gmra.mrb[0].mxu0 %v1862
      %v1932 = vpop.f32.mrb[0].mxu0
      %v1933 = vadd.f32 0.0, %v1932
      %v1934 = vpop.f32.mrb[0].mxu0
      %v1935 = vpop.f32.mrb[0].mxu0
      %v1936 = vadd.f32 0.0, %v1935
      %v1937 = vpop.f32.mrb[0].mxu0
      %1938 = vmatprep.mubr.bf16.mxu0 0
      %1939 = vmatmul.mubr.bf16.gmra.mrb[0].mxu0 %v1863
      %v1940 = vpop.f32.mrb[0].mxu0
      %v1941 = vadd.f32 0.0, %v1940
      %v1942 = vpop.f32.mrb[0].mxu0
      %v1943 = vpop.f32.mrb[0].mxu0
      %v1944 = vadd.f32 0.0, %v1943
      %v1945 = vpop.f32.mrb[0].mxu0
      %1946 = vmatprep.mubr.bf16.mxu0 0
      %1947 = vmatmul.mubr.bf16.gmra.mrb[0].mxu0 %v1864
      %v1948 = vpop.f32.mrb[0].mxu0
      %v1949 = vadd.f32 0.0, %v1948
      %v1950 = vpop.f32.mrb[0].mxu0
      %v1951 = vpop.f32.mrb[0].mxu0
      %v1952 = vadd.f32 0.0, %v1951
      %v1953 = vpop.f32.mrb[0].mxu0
      %1954 = vmatprep.mubr.bf16.mxu0 0
      %1955 = vmatmul.mubr.bf16.gmra.mrb[0].mxu0 %v1865
      %v1956 = vpop.f32.mrb[0].mxu0
      %v1957 = vadd.f32 0.0, %v1956
      %v1958 = vpop.f32.mrb[0].mxu0
      %v1959 = vpop.f32.mrb[0].mxu0
      %v1960 = vadd.f32 0.0, %v1959
      %v1961 = vpop.f32.mrb[0].mxu0
      %1962 = vdwg.mxu0
      %1963 = vst.msk [vmem:[%s197] sm:$0xff] %vm1453, %v1901
      %1964 = vst.msk [vmem:[%s197 + $0x8] sm:$0xff] %vm1453, %v1904
      %1965 = vst.msk [vmem:[%s197 + $0x10] sm:$0xff] %vm1453, %v1909
      %1966 = vst.msk [vmem:[%s197 + $0x18] sm:$0xff] %vm1453, %v1912
      %1967 = vst.msk [vmem:[%s197 + $0x20] sm:$0xff] %vm1453, %v1917
      %1968 = vst.msk [vmem:[%s197 + $0x28] sm:$0xff] %vm1453, %v1920
      %1969 = vst.msk [vmem:[%s197 + $0x30] sm:$0xff] %vm1453, %v1925
      %1970 = vst.msk [vmem:[%s197 + $0x38] sm:$0xff] %vm1453, %v1928
      %1971 = vst.msk [vmem:[%s197 + $0x40] sm:$0xff] %vm1453, %v1933
      %1972 = vst.msk [vmem:[%s197 + $0x48] sm:$0xff] %vm1453, %v1936
      %1973 = vst.msk [vmem:[%s197 + $0x50] sm:$0xff] %vm1453, %v1941
      %1974 = vst.msk [vmem:[%s197 + $0x58] sm:$0xff] %vm1453, %v1944
      %1975 = vst.msk [vmem:[%s197 + $0x60] sm:$0xff] %vm1453, %v1949
      %1976 = vst.msk [vmem:[%s197 + $0x68] sm:$0xff] %vm1453, %v1952
      %1977 = vst.msk [vmem:[%s197 + $0x70] sm:$0xff] %vm1453, %v1957
      %1978 = vst.msk [vmem:[%s197 + $0x78] sm:$0xff] %vm1453, %v1960
      %p1979 = scmp.lt.s32.totalorder %s15, 1
      %s1980 = scalar_select %p1979, %s15, 1
      %s1981 = smul.addr %s1980, 16
      %s1982 = smul.addr %s1981, 8
      %s1983 = scalar_lea.vmem %s4, %s1982
      // Predicated region
      $region37: #{head_forward.1} parent=35 // pred_check
        %p1984 = pneg %p122
      $region38: #{head_forward.1} parent=35 // pred_check_branch
        %1986 = sbr.rel (%p1984) target = $region40
      $region39: #{head_forward.1} parent=35 // pred_region
        _
      $region40: #{head_forward.1} parent=35 // pred_fallthru
        _
    $region36: #{head_forward.1} parent=5 // pred_fallthru
      _
    %p1987 = scmp.le.s32.totalorder 2, %s10
    // Predicated region
    $region41: #{head_forward.1} parent=5 // pred_check
      %p1988 = pneg %p1987
    $region42: #{head_forward.1} parent=5 // pred_check_branch
      %1990 = sbr.rel (%p1988) target = $region44
    $region43: #{head_forward.1} parent=5 // pred_region
      %s1991 = ssub.s32 %s10, 2
      // Predicated region
      $region45: #{head_forward.1} parent=43 // pred_check
        %p1992 = pneg %p128
      $region46: #{head_forward.1} parent=43 // pred_check_branch
        %1994 = sbr.rel (%p1992) target = $region48
      $region47: #{head_forward.1} parent=43 // pred_region
        %p1995 = scmp.lt.s32.totalorder %s16, 1
        %s1996 = scalar_select %p1995, %s16, 1
        %s1997 = smul.addr %s1996, 16
        %s1998 = smul.addr %s1997, 8
        %s1999 = scalar_lea.vmem %s4, %s1998
      $region48: #{head_forward.1} parent=43 // pred_fallthru
        _
    $region44: #{head_forward.1} parent=5 // pred_fallthru
      _
  $region6: #{head_forward.1} parent=0 // loop_footer
    %s14 = sadd.s32 1, %s10
  $region7: #{head_forward.1} parent=0 // loop_footer_branch
    %9 = sbr.rel target = $region3
  $region8: #{head_forward.1} parent=0 // loop_exit
    _

</llo_original>
